<compile_context>
chip_gen: v5e
topology: v5e:2x2
jax: 0.10.0
libtpu: 0.0.40
codegen_flags: <defaults>
</compile_context>

<pallas_src>
import functools

import jax
import jax.numpy as jnp
from jax.experimental import pallas as pl
from jax.experimental.pallas import tpu as pltpu


# -----------------------------------------------------------------------------
# Pallas kernels
# -----------------------------------------------------------------------------
def _conv_taps_kernel(a_ref, w_ref, b_ref, *rest, taps, m_out, relu,
                      has_residual):
    """Implicit-GEMM conv tile.

    a_ref : (P, Lp, K)   bf16  flattened (phase, row, channel) activation
    w_ref : (T, K, TN)   bf16  per-tap weight (BN scale already folded in)
    b_ref : (1, TN)      f32   folded BN bias
    rest  : [res_ref (m_out, TN) bf16,] out_ref (m_out, TN)

    Each tap is a matmul of a statically shifted row window of the activation
    block with that tap's weight slice; offsets are Python constants, so no
    patch tensor exists in HBM.  Accumulation is in f32 values (no zero-init
    pass, single store in the epilogue).
    """
    if has_residual:
        res_ref, out_ref = rest
    else:
        (out_ref,) = rest

    acc = None
    for t, (ph, off) in enumerate(taps):
        a = a_ref[ph, pl.ds(off, m_out), :]
        contrib = jnp.dot(a, w_ref[t], preferred_element_type=jnp.float32)
        acc = contrib if acc is None else acc + contrib

    acc = acc + b_ref[...]
    if has_residual:
        acc = acc + res_ref[...].astype(jnp.float32)
    if relu:
        acc = jnp.maximum(acc, 0.0)
    out_ref[...] = acc.astype(out_ref.dtype)


def _maxpool_taps_kernel(a_ref, o_ref, *, taps, m_out):
    r = None
    for ph, off in taps:
        v = a_ref[ph, pl.ds(off, m_out), :]
        r = v if r is None else jnp.maximum(r, v)
    o_ref[...] = r


def _mean_kernel(x_ref, o_ref):
    # (N, HW, C) -> (N, C) global average pool, f32 math.
    o_ref[...] = jnp.mean(x_ref[...].astype(jnp.float32), axis=1)


# -----------------------------------------------------------------------------
# Fused conv/matmul wrapper
# -----------------------------------------------------------------------------
def _fused_matmul_taps(phases, w_taps, bias, *, taps, m_out, residual=None,
                       relu=False, out_dtype=jnp.bfloat16):
    """phases (N,P,Lp,K) bf16, w_taps (T,K,Cout) bf16, bias (1,Cout) f32,
    residual (N,m_out,Cout) bf16 optional -> (N, m_out, Cout) out_dtype."""
    N, P, Lp, K = phases.shape
    T, _, Cout = w_taps.shape
    TN = Cout if Cout <= 256 else 256
    assert Cout % TN == 0, (Cout, TN)

    inputs = [phases, w_taps, bias]
    in_specs = [
        pl.BlockSpec((None, P, Lp, K), lambda n, j: (n, 0, 0, 0)),
        pl.BlockSpec((T, K, TN), lambda n, j: (0, 0, j)),
        pl.BlockSpec((1, TN), lambda n, j: (0, j)),
    ]
    if residual is not None:
        inputs.append(residual)
        in_specs.append(
            pl.BlockSpec((None, m_out, TN), lambda n, j: (n, 0, j)))

    kernel = functools.partial(_conv_taps_kernel, taps=tuple(taps),
                               m_out=m_out, relu=relu,
                               has_residual=residual is not None)
    return pl.pallas_call(
        kernel,
        out_shape=jax.ShapeDtypeStruct((N, m_out, Cout), out_dtype),
        grid=(N, Cout // TN),
        in_specs=in_specs,
        out_specs=pl.BlockSpec((None, m_out, TN), lambda n, j: (n, 0, j)),
        compiler_params=pltpu.CompilerParams(
            dimension_semantics=("parallel", "parallel")),
    )(*inputs)


# -----------------------------------------------------------------------------
# Phase / tap construction (pure data movement, ~1x the input at most)
# -----------------------------------------------------------------------------
def _build_phases_and_taps(x, kh, kw, stride, padding, dilation,
                           pad_value=0.0):
    """Pad + (for stride>1) phase-decompose the NHWC input and return
      phases : (N, P, Hs*Ws, C)
      taps   : list of (phase_index, row_offset)  -- one per (i, j) tap
      OH, OW : valid output spatial size
      Ws     : extended output width (the first OW columns are valid)."""
    N, H, W, C = x.shape
    s = stride
    OH = (H + 2 * padding - dilation * (kh - 1) - 1) // s + 1
    OW = (W + 2 * padding - dilation * (kw - 1) - 1) // s + 1
    max_di = (dilation * (kh - 1)) // s
    max_dj = (dilation * (kw - 1)) // s
    Hs = OH + max_di + (1 if max_dj > 0 else 0)
    Ws = OW + max_dj
    Hp, Wp = Hs * s, Ws * s
    pad_b, pad_r = Hp - H - padding, Wp - W - padding
    assert pad_b >= 0 and pad_r >= 0

    xp = jnp.pad(x, ((0, 0), (padding, pad_b), (padding, pad_r), (0, 0)),
                 constant_values=pad_value)

    r_rows = sorted({(i * dilation) % s for i in range(kh)})
    r_cols = sorted({(j * dilation) % s for j in range(kw)})
    if s == 1:
        phases = xp.reshape(N, 1, Hs * Ws, C)
        pidx = {(0, 0): 0}
    else:
        plist, pidx = [], {}
        for ri in r_rows:
            for rj in r_cols:
                pidx[(ri, rj)] = len(plist)
                plist.append(xp[:, ri::s, rj::s, :].reshape(N, Hs * Ws, C))
        phases = jnp.stack(plist, axis=1)  # (N, P, Hs*Ws, C)

    taps = []
    for i in range(kh):
        for j in range(kw):
            ri, di = (i * dilation) % s, (i * dilation) // s
            rj, dj = (j * dilation) % s, (j * dilation) // s
            taps.append((pidx[(ri, rj)], di * Ws + dj))
    return phases, taps, OH, OW, Ws


def _extract_patches(x, kh, kw, stride, padding, dilation):
    """im2col -- used ONLY for the tiny-Cin stem (Cin*kh*kw small)."""
    N, H, W, C = x.shape
    OH = (H + 2 * padding - dilation * (kh - 1) - 1) // stride + 1
    OW = (W + 2 * padding - dilation * (kw - 1) - 1) // stride + 1
    xp = jnp.pad(x, ((0, 0), (padding, padding), (padding, padding), (0, 0)))
    slices = []
    for i in range(kh):
        for j in range(kw):
            hs, ws = i * dilation, j * dilation
            slices.append(xp[:, hs:hs + (OH - 1) * stride + 1:stride,
                              ws:ws + (OW - 1) * stride + 1:stride, :])
    patches = jnp.stack(slices, axis=3)  # (N, OH, OW, KK, C)
    return patches, OH, OW


# -----------------------------------------------------------------------------
# Weight preparation (BN scale folded, groups packed block-diagonally)
# -----------------------------------------------------------------------------
def _fold_bn_weight(w, scale, groups):
    """PyTorch weight (Cout, Cin/groups, KH, KW) + BN scale (Cout,) ->
    dense per-tap weight (KH*KW, Cin, Cout), block-diagonal over groups,
    with the BN scale folded into the output columns."""
    Cout, cg_in, KH, KW = w.shape
    G = groups
    cg_out = Cout // G
    wt = jnp.transpose(w.reshape(G, cg_out, cg_in, KH, KW), (3, 4, 0, 2, 1))
    wt = wt.reshape(KH * KW, G, cg_in, cg_out)
    if G == 1:
        wd = wt.reshape(KH * KW, cg_in, Cout)
    else:
        eye = jnp.eye(G, dtype=wt.dtype)
        wd = jnp.einsum("tgio,gh->tgiho", wt, eye)
        wd = wd.reshape(KH * KW, G * cg_in, Cout)
    return wd * scale.astype(wd.dtype)[None, None, :]


# -----------------------------------------------------------------------------
# Layer wrappers
# -----------------------------------------------------------------------------
def conv2d_bn(x, w, scale, bias, stride=1, padding=0, dilation=1, groups=1,
              residual=None, relu=False, out_dtype=jnp.bfloat16):
    """Conv2d + folded BN (+ residual) (+ ReLU).  x NHWC -> NHWC."""
    x = x.astype(jnp.bfloat16)
    N, H, W, Cin = x.shape
    Cout, _, KH, KW = w.shape
    wd = _fold_bn_weight(w, scale, groups)  # (KK, Cin, Cout) f32

    if KH == 1 and KW == 1:
        assert padding == 0
        x_in = x[:, ::stride, ::stride, :] if stride > 1 else x
        OH, OW = x_in.shape[1], x_in.shape[2]
        Ws = OW
        phases = x_in.reshape(N, 1, OH * OW, Cin)
        taps = [(0, 0)]
    elif Cin * KH * KW <= 256:
        # Tiny-Cin stem (7x7, Cin=3): fold taps into K; the patch tensor is
        # small because Cin is tiny, and it gives one big-K matmul.
        patches, OH, OW = _extract_patches(x, KH, KW, stride, padding,
                                           dilation)
        Ws = OW
        phases = patches.reshape(N, 1, OH * OW, KH * KW * Cin)
        taps = [(0, 0)]
        wd = wd.reshape(1, KH * KW * Cin, Cout)
    else:
        phases, taps, OH, OW, Ws = _build_phases_and_taps(
            x, KH, KW, stride, padding, dilation, pad_value=0.0)

    m_out = OH * Ws
    res_flat = None
    if residual is not None:
        assert Ws == OW  # residual fusion only used on 1x1 convs
        res_flat = residual.astype(jnp.bfloat16).reshape(N, OH * OW, Cout)

    out = _fused_matmul_taps(
        phases, wd.astype(jnp.bfloat16),
        bias.astype(jnp.float32).reshape(1, Cout),
        taps=taps, m_out=m_out, residual=res_flat, relu=relu,
        out_dtype=out_dtype)

    out = out.reshape(N, OH, Ws, Cout)
    if Ws != OW:
        out = out[:, :, :OW, :]  # drop the few garbage columns (ow >= OW)
    return out


def maxpool2d(x, k=3, stride=2, padding=1):
    x = x.astype(jnp.bfloat16)
    N, H, W, C = x.shape
    phases, taps, OH, OW, Ws = _build_phases_and_taps(
        x, k, k, stride, padding, 1, pad_value=float("-inf"))
    _, P, Lp, _ = phases.shape
    m_out = OH * Ws
    out = pl.pallas_call(
        functools.partial(_maxpool_taps_kernel, taps=tuple(taps),
                          m_out=m_out),
        out_shape=jax.ShapeDtypeStruct((N, m_out, C), jnp.bfloat16),
        grid=(N,),
        in_specs=[pl.BlockSpec((None, P, Lp, C), lambda n: (n, 0, 0, 0))],
        out_specs=pl.BlockSpec((None, m_out, C), lambda n: (n, 0, 0)),
        compiler_params=pltpu.CompilerParams(
            dimension_semantics=("parallel",)),
    )(phases)
    out = out.reshape(N, OH, Ws, C)
    if Ws != OW:
        out = out[:, :, :OW, :]
    return out


def global_avgpool(x):
    N, H, W, C = x.shape
    xr = x.reshape(N, H * W, C)
    return pl.pallas_call(
        _mean_kernel,
        out_shape=jax.ShapeDtypeStruct((N, C), jnp.float32),
    )(xr)


def fc_layer(pooled, w, b):
    # TODO(synk): pooled f32 is downcast to bf16 for the MXU; logits lose a
    # little precision vs an f32 GEMM.
    N, C = pooled.shape
    num_classes = w.shape[0]
    phases = pooled.astype(jnp.bfloat16).reshape(1, 1, N, C)
    w_t = jnp.transpose(w).astype(jnp.bfloat16).reshape(1, C, num_classes)
    bias = b.astype(jnp.float32).reshape(1, num_classes)
    out = _fused_matmul_taps(phases, w_t, bias, taps=[(0, 0)], m_out=N,
                             relu=False, out_dtype=jnp.float32)
    return out.reshape(N, num_classes)


# -----------------------------------------------------------------------------
# Deterministic parameter construction (synthetic weights)
# -----------------------------------------------------------------------------
def _init_conv(key, cout, cin_g, kh, kw):
    fan_in = cin_g * kh * kw
    return (jax.random.normal(key, (cout, cin_g, kh, kw), jnp.float32)
            / jnp.sqrt(float(fan_in)))


def _init_bn(key, c, eps=1e-5):
    k1, k2, k3, k4 = jax.random.split(key, 4)
    gamma = 1.0 + 0.1 * jax.random.normal(k1, (c,), jnp.float32)
    beta = 0.1 * jax.random.normal(k2, (c,), jnp.float32)
    mean = 0.1 * jax.random.normal(k3, (c,), jnp.float32)
    var = 1.0 + 0.1 * jnp.abs(jax.random.normal(k4, (c,), jnp.float32))
    scale = gamma / jnp.sqrt(var + eps)
    bias = beta - mean * scale
    return scale, bias


def make_resnext_params(key, arch_cfg, groups, base_channels, bands,
                        num_classes):
    expansion = 4
    keys = iter(jax.random.split(key, 256))
    params = {}
    params["conv1"] = _init_conv(next(keys), 64, bands, 7, 7)
    params["bn1"] = _init_bn(next(keys), 64)

    in_c = 64
    layer_channels = [64, 128, 256, 512]
    layer_strides = [1, 2, 2, 2]      # downsample_ratio == 32
    layer_dilations = [1, 1, 1, 1]
    all_layers = []
    for li in range(4):
        ch = layer_channels[li]
        blocks = []
        for bi in range(arch_cfg[li]):
            stride = layer_strides[li] if bi == 0 else 1
            width = int(ch * (base_channels / 64.0)) * groups
            out_c = ch * expansion
            bp = {"stride": stride, "dilation": layer_dilations[li]}
            bp["w1"] = _init_conv(next(keys), width, in_c, 1, 1)
            bp["s1"], bp["b1"] = _init_bn(next(keys), width)
            bp["w2"] = _init_conv(next(keys), width, width // groups, 3, 3)
            bp["s2"], bp["b2"] = _init_bn(next(keys), width)
            bp["w3"] = _init_conv(next(keys), out_c, width, 1, 1)
            bp["s3"], bp["b3"] = _init_bn(next(keys), out_c)
            if stride != 1 or in_c != out_c:
                bp["wd"] = _init_conv(next(keys), out_c, in_c, 1, 1)
                bp["sd"], bp["bd"] = _init_bn(next(keys), out_c)
            blocks.append(bp)
            in_c = out_c
        all_layers.append(blocks)
    params["layers"] = all_layers
    params["fc_w"] = (jax.random.normal(next(keys),
                                        (num_classes, 512 * expansion),
                                        jnp.float32)
                      / jnp.sqrt(512.0 * expansion))
    params["fc_b"] = 0.01 * jax.random.normal(next(keys), (num_classes,),
                                              jnp.float32)
    return params


# -----------------------------------------------------------------------------
# Forward pass
# -----------------------------------------------------------------------------
def bottleneck_forward(x, p, groups):
    stride, dilation = p["stride"], p["dilation"]
    identity = x
    out = conv2d_bn(x, p["w1"], p["s1"], p["b1"],
                    stride=1, padding=0, relu=True)
    out = conv2d_bn(out, p["w2"], p["s2"], p["b2"],
                    stride=stride, padding=dilation, dilation=dilation,
                    groups=groups, relu=True)
    if "wd" in p:
        identity = conv2d_bn(x, p["wd"], p["sd"], p["bd"],
                             stride=stride, padding=0, relu=False)
    # conv3 + bn3 + residual add (f32 inside kernel) + relu, fully fused
    out = conv2d_bn(out, p["w3"], p["s3"], p["b3"],
                    stride=1, padding=0, residual=identity, relu=True)
    return out


def resnext_forward(params, x_nchw, groups):
    x = jnp.transpose(x_nchw, (0, 2, 3, 1))            # NCHW -> NHWC
    out = conv2d_bn(x, params["conv1"], params["bn1"][0], params["bn1"][1],
                    stride=2, padding=3, relu=True)     # conv1 + bn1 + relu
    out = maxpool2d(out, k=3, stride=2, padding=1)      # maxpool
    for blocks in params["layers"]:                     # layer1..layer4
        for bp in blocks:
            out = bottleneck_forward(out, bp, groups)
    pooled = global_avgpool(out)                        # adaptive avgpool(1,1)
    logits = fc_layer(pooled, params["fc_w"], params["fc_b"])
    return logits


# -----------------------------------------------------------------------------
if __name__ == "__main__":
    key = jax.random.PRNGKey(0)
    pkey, xkey = jax.random.split(key)

    arch_cfg = [1, 1, 1, 1]      # small synthetic config
    groups = 2
    base_channels = 32           # width per group -> width == channels
    bands = 3
    num_classes = 10

    params = make_resnext_params(pkey, arch_cfg, groups, base_channels,
                                 bands, num_classes)
    # PyTorch-style NCHW input
    x = jax.random.normal(xkey, (2, bands, 64, 64), jnp.float32)

    logits = resnext_forward(params, x, groups)
    logits = jax.block_until_ready(logits)

    assert logits.shape == (2, num_classes)
    assert bool(jnp.all(jnp.isfinite(logits)))
    print("KERNEL_OK")
</pallas_src>

<mosaic_0001>
module attributes {stable_mosaic.version = 11 : i64} {
  func.func @_conv_taps_kernel(%arg0: i32, %arg1: i32, %arg2: memref<1x1x1024x147xbf16, #tpu.memory_space<vmem>>, %arg3: memref<1x147x64xbf16, #tpu.memory_space<vmem>>, %arg4: memref<1x64xf32, #tpu.memory_space<vmem>>, %arg5: memref<1x1024x64xbf16, #tpu.memory_space<vmem>>) attributes {dimension_semantics = [#tpu.dimension_semantics<parallel>, #tpu.dimension_semantics<parallel>], iteration_bounds = array<i64: 2, 1>, scalar_prefetch = 0 : i64, scratch_operands = 0 : i64, tpu.core_type = #tpu.core_type<tc>, window_params = [{transform_indices = @transform_0, window_bounds = array<i64: 1, 1, 1024, 147>}, {transform_indices = @transform_1, window_bounds = array<i64: 1, 147, 64>}, {transform_indices = @transform_2, window_bounds = array<i64: 1, 64>}, {transform_indices = @transform_3, window_bounds = array<i64: 1, 1024, 64>}]} {
    %c0 = arith.constant 0 : index
    %c0_0 = arith.constant 0 : index
    %c0_1 = arith.constant 0 : index
    %c0_2 = arith.constant 0 : index
    %0 = vector.load %arg2[%c0, %c0_0, %c0_1, %c0_2] : memref<1x1x1024x147xbf16, #tpu.memory_space<vmem>>, vector<1x1x1024x147xbf16>
    %1 = vector.shape_cast %0 : vector<1x1x1024x147xbf16> to vector<1024x147xbf16>
    %c0_3 = arith.constant 0 : index
    %c0_4 = arith.constant 0 : index
    %c0_5 = arith.constant 0 : index
    %2 = vector.load %arg3[%c0_3, %c0_4, %c0_5] : memref<1x147x64xbf16, #tpu.memory_space<vmem>>, vector<1x147x64xbf16>
    %3 = vector.shape_cast %2 : vector<1x147x64xbf16> to vector<147x64xbf16>
    %cst = arith.constant dense<0.000000e+00> : vector<1024x64xf32>
    %4 = tpu.matmul %1, %3, %cst {dimension_numbers = #tpu.dot_dimension_numbers<[1], [0], [0], [1], [0, 0, 1, 1], [], []>} : vector<1024x147xbf16>, vector<147x64xbf16>, vector<1024x64xf32> -> vector<1024x64xf32>
    %c0_6 = arith.constant 0 : index
    %c0_7 = arith.constant 0 : index
    %5 = vector.load %arg4[%c0_6, %c0_7] : memref<1x64xf32, #tpu.memory_space<vmem>>, vector<1x64xf32>
    %6 = vector.broadcast %5 : vector<1x64xf32> to vector<1024x64xf32>
    %7 = arith.addf %4, %6 : vector<1024x64xf32>
    %cst_8 = arith.constant 0.000000e+00 : f32
    %8 = vector.broadcast %cst_8 : f32 to vector<1024x64xf32>
    %9 = arith.maximumf %7, %8 : vector<1024x64xf32>
    %10 = arith.truncf %9 : vector<1024x64xf32> to vector<1024x64xbf16>
    %c0_9 = arith.constant 0 : index
    %c0_10 = arith.constant 0 : index
    %c0_11 = arith.constant 0 : index
    %11 = vector.load %arg5[%c0_9, %c0_10, %c0_11] : memref<1x1024x64xbf16, #tpu.memory_space<vmem>>, vector<1x1024x64xbf16>
    %12 = vector.shape_cast %11 : vector<1x1024x64xbf16> to vector<1024x64xbf16>
    %13 = vector.shape_cast %10 : vector<1024x64xbf16> to vector<1x1024x64xbf16>
    tpu.vector_store %arg5[%c0_9, %c0_10, %c0_11], %13 {strides = array<i32>} : memref<1x1024x64xbf16, #tpu.memory_space<vmem>>, vector<1x1024x64xbf16>,
    return
  }
  func.func @transform_0(%arg0: i32, %arg1: i32) -> (i32, i32, i32, i32) {
    %c0_i32 = arith.constant 0 : i32
    %c0_i32_0 = arith.constant 0 : i32
    %c0_i32_1 = arith.constant 0 : i32
    %c0_i32_2 = arith.constant 0 : i32
    return %arg0, %c0_i32, %c0_i32_0, %c0_i32_1 : i32, i32, i32, i32
  }
  func.func @transform_1(%arg0: i32, %arg1: i32) -> (i32, i32, i32) {
    %c0_i32 = arith.constant 0 : i32
    %c0_i32_0 = arith.constant 0 : i32
    %c0_i32_1 = arith.constant 0 : i32
    return %c0_i32, %c0_i32_0, %arg1 : i32, i32, i32
  }
  func.func @transform_2(%arg0: i32, %arg1: i32) -> (i32, i32) {
    %c0_i32 = arith.constant 0 : i32
    %c0_i32_0 = arith.constant 0 : i32
    return %c0_i32, %arg1 : i32, i32
  }
  func.func @transform_3(%arg0: i32, %arg1: i32) -> (i32, i32, i32) {
    %c0_i32 = arith.constant 0 : i32
    %c0_i32_0 = arith.constant 0 : i32
    return %arg0, %c0_i32, %arg1 : i32, i32, i32
  }
}

</mosaic_0001>

<llo_original>
// kernel: tpu_custom_call.1
$region0: #{tpu_custom_call.1}
  #allocation0 [shape = 'u32[]', space=smem, size = 0x4, offset = 0x4, fixed_abs, tag = 'smem constant byte address 0x4 - core index']
  #allocation1 [shape = 'u32[72,128]{1,0:T(1,128)}', space=vmem, size = 0x9000, scoped, tag = 'internal scratch']
  %s0 = inlined_call_operand.vmem [shape: bf16[2,1,1024,147], index: 0, kind: input, shape index: {}]
  %s1 = inlined_call_operand.vmem [shape: bf16[1,147,64], index: 1, kind: input, shape index: {}]
  %s2 = inlined_call_operand.vmem [shape: f32[1,64], index: 2, kind: input, shape index: {}]
  %s3 = inlined_call_operand.vmem [shape: bf16[2,1024,64], index: 3, kind: output, shape index: {}]
  %s4 = sld [smem:[#allocation0]]
  $region45: #{tpu_custom_call.1} parent=0
    _
  %s6 = ssub.s32 1, %s4
  %s7 = scalar_select 0, %s6, %s4
  loop: start=0, step=1, limit=4
  $region2: #{tpu_custom_call.1} parent=0 // loop_pre_header
    _
  $region3: #{tpu_custom_call.1} parent=0 // loop_header
    %s9 = sphi 0, %s13
    %p10 = scmp.ge.s32.totalorder %s9, 4
    %s16 = sphi 0, %s28
    %s17 = sphi 0, %s24
    %s18 = sphi 0, %s16
    %s19 = sphi 0, %s17
    %s20 = sphi 0, %s18
    %s21 = sphi 0, %s19
    %s31 = sphi 0, %s33
    %s34 = sphi 0, %s31
    %s35 = sphi 0, %s34
    %s51 = sphi 0, %s35
    %s57 = sphi 0, %s59
    %s60 = sphi 0, %s57
    %s61 = sphi 0, %s60
    %s77 = sphi 0, %s61
    %s83 = sphi 0, %s85
    %s86 = sphi 0, %s83
    %s87 = sphi 0, %s86
    %s103 = sphi 0, %s87
    %s111 = sphi 0, %s113
    %s114 = sphi 0, %s111
    %s115 = sphi 0, %s114
    %s131 = sphi 0, %s115
  $region4: #{tpu_custom_call.1} parent=0 // loop_header_branch
    %12 = sbr.rel (%p10) target = $region8
  $region5: #{tpu_custom_call.1} parent=0 // loop_body
    %s14 = ssub.s32 %s9, 1
    %s15 = ssub.s32 %s9, 2
    %s22 = sadd.s32 1, %s17
    %p23 = scmp.ge.s32.totalorder %s22, 1
    %s24 = scalar_select %p23, 0, %s22
    %s25 = sadd.s32 1, %s16
    %s26 = scalar_select %p23, %s25, %s16
    %p27 = scmp.ge.s32.totalorder %s26, 2
    %s28 = scalar_select %p27, 0, %s26
    %s29 = ssub.s32 %s16, %s28
    %p30 = scmp.eq.s32.totalorder %s29, 0
    %s32 = sadd.s32 %s31, 1
    %s33 = scalar_select %p30, %s31, %s32
    %p36 = pneg %p30
    %p37 = scmp.eq.s32.totalorder %s9, 1
    %p38 = por %p36, %p37
    %p39 = scmp.ne.s32.totalorder %s31, %s34
    %p40 = scmp.eq.s32.totalorder %s9, 0
    %p41 = por %p39, %p40
    %p42 = scmp.ne.s32.totalorder %s31, %s34
    %p43 = scmp.eq.s32.totalorder %s14, 1
    %p44 = por %p42, %p43
    %p45 = scmp.ne.s32.totalorder %s34, %s35
    %p46 = scmp.eq.s32.totalorder %s14, 0
    %p47 = por %p45, %p46
    %p48 = scmp.ne.s32.totalorder %s34, %s35
    %p49 = scmp.eq.s32.totalorder %s15, 1
    %p50 = por %p48, %p49
    %p52 = scmp.ne.s32.totalorder %s35, %s51
    %p53 = scmp.eq.s32.totalorder %s15, 0
    %p54 = por %p52, %p53
    %s55 = ssub.s32 %s17, %s24
    %p56 = scmp.eq.s32.totalorder %s55, 0
    %s58 = sadd.s32 %s57, 1
    %s59 = scalar_select %p56, %s57, %s58
    %p62 = pneg %p56
    %p63 = scmp.eq.s32.totalorder %s9, 1
    %p64 = por %p62, %p63
    %p65 = scmp.ne.s32.totalorder %s57, %s60
    %p66 = scmp.eq.s32.totalorder %s9, 0
    %p67 = por %p65, %p66
    %p68 = scmp.ne.s32.totalorder %s57, %s60
    %p69 = scmp.eq.s32.totalorder %s14, 1
    %p70 = por %p68, %p69
    %p71 = scmp.ne.s32.totalorder %s60, %s61
    %p72 = scmp.eq.s32.totalorder %s14, 0
    %p73 = por %p71, %p72
    %p74 = scmp.ne.s32.totalorder %s60, %s61
    %p75 = scmp.eq.s32.totalorder %s15, 1
    %p76 = por %p74, %p75
    %p78 = scmp.ne.s32.totalorder %s61, %s77
    %p79 = scmp.eq.s32.totalorder %s15, 0
    %p80 = por %p78, %p79
    %s81 = ssub.s32 %s17, %s24
    %p82 = scmp.eq.s32.totalorder %s81, 0
    %s84 = sadd.s32 %s83, 1
    %s85 = scalar_select %p82, %s83, %s84
    %p88 = pneg %p82
    %p89 = scmp.eq.s32.totalorder %s9, 1
    %p90 = por %p88, %p89
    %p91 = scmp.ne.s32.totalorder %s83, %s86
    %p92 = scmp.eq.s32.totalorder %s9, 0
    %p93 = por %p91, %p92
    %p94 = scmp.ne.s32.totalorder %s83, %s86
    %p95 = scmp.eq.s32.totalorder %s14, 1
    %p96 = por %p94, %p95
    %p97 = scmp.ne.s32.totalorder %s86, %s87
    %p98 = scmp.eq.s32.totalorder %s14, 0
    %p99 = por %p97, %p98
    %p100 = scmp.ne.s32.totalorder %s86, %s87
    %p101 = scmp.eq.s32.totalorder %s15, 1
    %p102 = por %p100, %p101
    %p104 = scmp.ne.s32.totalorder %s87, %s103
    %p105 = scmp.eq.s32.totalorder %s15, 0
    %p106 = por %p104, %p105
    %s107 = ssub.s32 %s16, %s28
    %s108 = ssub.s32 %s17, %s24
    %s109 = sor.u32 %s107, %s108
    %p110 = scmp.eq.s32.totalorder %s109, 0
    %s112 = sadd.s32 %s111, 1
    %s113 = scalar_select %p110, %s111, %s112
    %p116 = pneg %p110
    %p117 = scmp.eq.s32.totalorder %s9, 1
    %p118 = por %p116, %p117
    %p119 = scmp.ne.s32.totalorder %s111, %s114
    %p120 = scmp.eq.s32.totalorder %s9, 0
    %p121 = por %p119, %p120
    %p122 = scmp.ne.s32.totalorder %s111, %s114
    %p123 = scmp.eq.s32.totalorder %s14, 1
    %p124 = por %p122, %p123
    %p125 = scmp.ne.s32.totalorder %s114, %s115
    %p126 = scmp.eq.s32.totalorder %s14, 0
    %p127 = por %p125, %p126
    %p128 = scmp.ne.s32.totalorder %s114, %s115
    %p129 = scmp.eq.s32.totalorder %s15, 1
    %p130 = por %p128, %p129
    %p132 = scmp.ne.s32.totalorder %s115, %s131
    %p133 = scmp.eq.s32.totalorder %s15, 0
    %p134 = por %p132, %p133
    %p135 = scmp.le.s32.totalorder 1, %s9
    %p136 = scmp.lt.s32.totalorder %s9, 3
    %p137 = pnand %p135, %p136
    %p138 = pneg %p137
    // Predicated region
    $region9: #{tpu_custom_call.1} parent=5 // pred_check
      _
    $region10: #{tpu_custom_call.1} parent=5 // pred_check_branch
      %140 = sbr.rel (%p137) target = $region12
    $region11: #{tpu_custom_call.1} parent=5 // pred_region
      %s141 = ssub.s32 %s9, 1
      // Predicated region
      $region13: #{tpu_custom_call.1} parent=11 // pred_check
        %p142 = pneg %p73
      $region14: #{tpu_custom_call.1} parent=11 // pred_check_branch
        %144 = sbr.rel (%p142) target = $region16
      $region15: #{tpu_custom_call.1} parent=11 // pred_region
        %p145 = scmp.lt.s32.totalorder %s19, 0
        %s146 = scalar_select %p145, %s19, 0
        %s147 = smul.addr %s146, 4
        %s148 = scalar_lea.vmem %s1, %s147
      $region16: #{tpu_custom_call.1} parent=11 // pred_fallthru
        _
      // Predicated region
      $region17: #{tpu_custom_call.1} parent=11 // pred_check
        %p149 = pneg %p99
      $region18: #{tpu_custom_call.1} parent=11 // pred_check_branch
        %151 = sbr.rel (%p149) target = $region20
      $region19: #{tpu_custom_call.1} parent=11 // pred_region
        %p152 = scmp.lt.s32.totalorder %s19, 0
        %s153 = scalar_select %p152, %s19, 0
        %s154 = scalar_lea.vmem %s2, %s153
      $region20: #{tpu_custom_call.1} parent=11 // pred_fallthru
        _
    $region12: #{tpu_custom_call.1} parent=5 // pred_fallthru
      _
    %p155 = scmp.lt.s32.totalorder %s9, 2
    // Predicated region
    $region21: #{tpu_custom_call.1} parent=5 // pred_check
      %p156 = pneg %p155
    $region22: #{tpu_custom_call.1} parent=5 // pred_check_branch
      %158 = sbr.rel (%p156) target = $region24
    $region23: #{tpu_custom_call.1} parent=5 // pred_region
      // Predicated region
      $region25: #{tpu_custom_call.1} parent=23 // pred_check
        %p159 = pneg %p41
      $region26: #{tpu_custom_call.1} parent=23 // pred_check_branch
        %161 = sbr.rel (%p159) target = $region28
      $region27: #{tpu_custom_call.1} parent=23 // pred_region
        %p162 = scmp.lt.s32.totalorder %s16, 1
        %s163 = scalar_select %p162, %s16, 1
        %s164 = smul.addr %s163, 256
        %s165 = smul.addr %s164, 4
        %s166 = scalar_lea.vmem %s0, %s165
      $region28: #{tpu_custom_call.1} parent=23 // pred_fallthru
        _
    $region24: #{tpu_custom_call.1} parent=5 // pred_fallthru
      _
    %p167 = scmp.le.s32.totalorder 1, %s9
    %p168 = scmp.lt.s32.totalorder %s9, 3
    %p169 = pnand %p167, %p168
    %p170 = pneg %p169
    // Predicated region
    $region29: #{tpu_custom_call.1} parent=5 // pred_check
      _
    $region30: #{tpu_custom_call.1} parent=5 // pred_check_branch
      %172 = sbr.rel (%p169) target = $region32
    $region31: #{tpu_custom_call.1} parent=5 // pred_region
      %s173 = ssub.s32 %s9, 1
      %p174 = scmp.lt.s32.totalorder %s18, 1
      %s175 = scalar_select %p174, %s18, 1
      %s176 = smul.addr %s175, 256
      %s177 = smul.addr %s176, 4
      %s178 = scalar_lea.vmem %s0, %s177
      %p179 = pneg %p47
      %p180 = pneg %p44
      %p181 = scmp.lt.s32.totalorder %s19, 0
      %s182 = scalar_select %p181, %s19, 0
      %s183 = smul.addr %s182, 4
      %s184 = scalar_lea.vmem %s1, %s183
      %p185 = pneg %p73
      %p186 = pneg %p70
      %p187 = scmp.lt.s32.totalorder %s19, 0
      %s188 = scalar_select %p187, %s19, 0
      %s189 = scalar_lea.vmem %s2, %s188
      %p190 = pneg %p99
      %p191 = pneg %p96
      %p192 = pneg %p127
      %p193 = pneg %p124
      %p194 = scmp.lt.s32.totalorder %s18, 1
      %s195 = scalar_select %p194, %s18, 1
      %p196 = scmp.lt.s32.totalorder %s19, 0
      %s197 = scalar_select %p196, %s19, 0
      %s198 = smul.addr %s195, 128
      %s199 = sadd.s32 %s197, %s198
      %s200 = smul.addr %s199, 4
      %s201 = scalar_lea.vmem %s3, %s200
      %p202 = scmp.lt.s32.totalorder %s18, 1
      %s203 = scalar_select %p202, %s18, 1
      %s204 = smul.addr %s203, 256
      %s205 = smul.addr %s204, 4
      %s206 = scalar_lea.vmem %s0, %s205
      %p207 = scmp.lt.s32.totalorder %s19, 0
      %s208 = scalar_select %p207, %s19, 0
      %s209 = smul.addr %s208, 4
      %s210 = scalar_lea.vmem %s1, %s209
      %p211 = scmp.lt.s32.totalorder %s19, 0
      %s212 = scalar_select %p211, %s19, 0
      %s213 = scalar_lea.vmem %s2, %s212
      %p214 = scmp.lt.s32.totalorder %s18, 1
      %s215 = scalar_select %p214, %s18, 1
      %p216 = scmp.lt.s32.totalorder %s19, 0
      %s217 = scalar_select %p216, %s19, 0
      %s218 = smul.addr %s215, 128
      %s219 = sadd.s32 %s217, %s218
      %s220 = smul.addr %s219, 4
      %s221 = scalar_lea.vmem %s3, %s220
      %v223 = vld [vmem:[%s206] sm:$0xff]
      %v224 = vld [vmem:[%s206 + $0x8] sm:$0xff]
      %v225 = vld [vmem:[%s206 + $0x10] sm:$0xff]
      %v226 = vld [vmem:[%s206 + $0x18] sm:$0xff]
      %v227 = vld [vmem:[%s206 + $0x20] sm:$0xff]
      %v228 = vld [vmem:[%s206 + $0x28] sm:$0xff]
      %v229 = vld [vmem:[%s206 + $0x30] sm:$0xff]
      %v230 = vld [vmem:[%s206 + $0x38] sm:$0xff]
      %v231 = vld [vmem:[%s206 + $0x40] sm:$0xff]
      %v232 = vld [vmem:[%s206 + $0x48] sm:$0xff]
      %v233 = vld [vmem:[%s206 + $0x50] sm:$0xff]
      %v234 = vld [vmem:[%s206 + $0x58] sm:$0xff]
      %v235 = vld [vmem:[%s206 + $0x60] sm:$0xff]
      %v236 = vld [vmem:[%s206 + $0x68] sm:$0xff]
      %v237 = vld [vmem:[%s206 + $0x70] sm:$0xff]
      %v238 = vld [vmem:[%s206 + $0x78] sm:$0xff]
      %v239 = vld [vmem:[%s206 + $0x80] sm:$0xff]
      %v240 = vld [vmem:[%s206 + $0x88] sm:$0xff]
      %v241 = vld [vmem:[%s206 + $0x90] sm:$0xff]
      %v242 = vld [vmem:[%s206 + $0x98] sm:$0xff]
      %v243 = vld [vmem:[%s206 + $0xa0] sm:$0xff]
      %v244 = vld [vmem:[%s206 + $0xa8] sm:$0xff]
      %v245 = vld [vmem:[%s206 + $0xb0] sm:$0xff]
      %v246 = vld [vmem:[%s206 + $0xb8] sm:$0xff]
      %v247 = vld [vmem:[%s206 + $0xc0] sm:$0xff]
      %v248 = vld [vmem:[%s206 + $0xc8] sm:$0xff]
      %v249 = vld [vmem:[%s206 + $0xd0] sm:$0xff]
      %v250 = vld [vmem:[%s206 + $0xd8] sm:$0xff]
      %v251 = vld [vmem:[%s206 + $0xe0] sm:$0xff]
      %v252 = vld [vmem:[%s206 + $0xe8] sm:$0xff]
      %v253 = vld [vmem:[%s206 + $0xf0] sm:$0xff]
      %v254 = vld [vmem:[%s206 + $0xf8] sm:$0xff]
      %v255 = vld [vmem:[%s206 + $0x100] sm:$0xff]
      %v256 = vld [vmem:[%s206 + $0x108] sm:$0xff]
      %v257 = vld [vmem:[%s206 + $0x110] sm:$0xff]
      %v258 = vld [vmem:[%s206 + $0x118] sm:$0xff]
      %v259 = vld [vmem:[%s206 + $0x120] sm:$0xff]
      %v260 = vld [vmem:[%s206 + $0x128] sm:$0xff]
      %v261 = vld [vmem:[%s206 + $0x130] sm:$0xff]
      %v262 = vld [vmem:[%s206 + $0x138] sm:$0xff]
      %v263 = vld [vmem:[%s206 + $0x140] sm:$0xff]
      %v264 = vld [vmem:[%s206 + $0x148] sm:$0xff]
      %v265 = vld [vmem:[%s206 + $0x150] sm:$0xff]
      %v266 = vld [vmem:[%s206 + $0x158] sm:$0xff]
      %v267 = vld [vmem:[%s206 + $0x160] sm:$0xff]
      %v268 = vld [vmem:[%s206 + $0x168] sm:$0xff]
      %v269 = vld [vmem:[%s206 + $0x170] sm:$0xff]
      %v270 = vld [vmem:[%s206 + $0x178] sm:$0xff]
      %v271 = vld [vmem:[%s206 + $0x180] sm:$0xff]
      %v272 = vld [vmem:[%s206 + $0x188] sm:$0xff]
      %v273 = vld [vmem:[%s206 + $0x190] sm:$0xff]
      %v274 = vld [vmem:[%s206 + $0x198] sm:$0xff]
      %v275 = vld [vmem:[%s206 + $0x1a0] sm:$0xff]
      %v276 = vld [vmem:[%s206 + $0x1a8] sm:$0xff]
      %v277 = vld [vmem:[%s206 + $0x1b0] sm:$0xff]
      %v278 = vld [vmem:[%s206 + $0x1b8] sm:$0xff]
      %v279 = vld [vmem:[%s206 + $0x1c0] sm:$0xff]
      %v280 = vld [vmem:[%s206 + $0x1c8] sm:$0xff]
      %v281 = vld [vmem:[%s206 + $0x1d0] sm:$0xff]
      %v282 = vld [vmem:[%s206 + $0x1d8] sm:$0xff]
      %v283 = vld [vmem:[%s206 + $0x1e0] sm:$0xff]
      %v284 = vld [vmem:[%s206 + $0x1e8] sm:$0xff]
      %v285 = vld [vmem:[%s206 + $0x1f0] sm:$0xff]
      %v286 = vld [vmem:[%s206 + $0x1f8] sm:$0xff]
      %v287 = vld [vmem:[%s206 + $0x200] sm:$0xff]
      %v288 = vld [vmem:[%s206 + $0x208] sm:$0xff]
      %v289 = vld [vmem:[%s206 + $0x210] sm:$0xff]
      %v290 = vld [vmem:[%s206 + $0x218] sm:$0xff]
      %v291 = vld [vmem:[%s206 + $0x220] sm:$0xff]
      %v292 = vld [vmem:[%s206 + $0x228] sm:$0xff]
      %v293 = vld [vmem:[%s206 + $0x230] sm:$0xff]
      %v294 = vld [vmem:[%s206 + $0x238] sm:$0xff]
      %v295 = vld [vmem:[%s206 + $0x240] sm:$0xff]
      %v296 = vld [vmem:[%s206 + $0x248] sm:$0xff]
      %v297 = vld [vmem:[%s206 + $0x250] sm:$0xff]
      %v298 = vld [vmem:[%s206 + $0x258] sm:$0xff]
      %v299 = vld [vmem:[%s206 + $0x260] sm:$0xff]
      %v300 = vld [vmem:[%s206 + $0x268] sm:$0xff]
      %v301 = vld [vmem:[%s206 + $0x270] sm:$0xff]
      %v302 = vld [vmem:[%s206 + $0x278] sm:$0xff]
      %v303 = vld [vmem:[%s206 + $0x280] sm:$0xff]
      %v304 = vld [vmem:[%s206 + $0x288] sm:$0xff]
      %v305 = vld [vmem:[%s206 + $0x290] sm:$0xff]
      %v306 = vld [vmem:[%s206 + $0x298] sm:$0xff]
      %v307 = vld [vmem:[%s206 + $0x2a0] sm:$0xff]
      %v308 = vld [vmem:[%s206 + $0x2a8] sm:$0xff]
      %v309 = vld [vmem:[%s206 + $0x2b0] sm:$0xff]
      %v310 = vld [vmem:[%s206 + $0x2b8] sm:$0xff]
      %v311 = vld [vmem:[%s206 + $0x2c0] sm:$0xff]
      %v312 = vld [vmem:[%s206 + $0x2c8] sm:$0xff]
      %v313 = vld [vmem:[%s206 + $0x2d0] sm:$0xff]
      %v314 = vld [vmem:[%s206 + $0x2d8] sm:$0xff]
      %v315 = vld [vmem:[%s206 + $0x2e0] sm:$0xff]
      %v316 = vld [vmem:[%s206 + $0x2e8] sm:$0xff]
      %v317 = vld [vmem:[%s206 + $0x2f0] sm:$0xff]
      %v318 = vld [vmem:[%s206 + $0x2f8] sm:$0xff]
      %v319 = vld [vmem:[%s206 + $0x300] sm:$0xff]
      %v320 = vld [vmem:[%s206 + $0x308] sm:$0xff]
      %v321 = vld [vmem:[%s206 + $0x310] sm:$0xff]
      %v322 = vld [vmem:[%s206 + $0x318] sm:$0xff]
      %v323 = vld [vmem:[%s206 + $0x320] sm:$0xff]
      %v324 = vld [vmem:[%s206 + $0x328] sm:$0xff]
      %v325 = vld [vmem:[%s206 + $0x330] sm:$0xff]
      %v326 = vld [vmem:[%s206 + $0x338] sm:$0xff]
      %v327 = vld [vmem:[%s206 + $0x340] sm:$0xff]
      %v328 = vld [vmem:[%s206 + $0x348] sm:$0xff]
      %v329 = vld [vmem:[%s206 + $0x350] sm:$0xff]
      %v330 = vld [vmem:[%s206 + $0x358] sm:$0xff]
      %v331 = vld [vmem:[%s206 + $0x360] sm:$0xff]
      %v332 = vld [vmem:[%s206 + $0x368] sm:$0xff]
      %v333 = vld [vmem:[%s206 + $0x370] sm:$0xff]
      %v334 = vld [vmem:[%s206 + $0x378] sm:$0xff]
      %v335 = vld [vmem:[%s206 + $0x380] sm:$0xff]
      %v336 = vld [vmem:[%s206 + $0x388] sm:$0xff]
      %v337 = vld [vmem:[%s206 + $0x390] sm:$0xff]
      %v338 = vld [vmem:[%s206 + $0x398] sm:$0xff]
      %v339 = vld [vmem:[%s206 + $0x3a0] sm:$0xff]
      %v340 = vld [vmem:[%s206 + $0x3a8] sm:$0xff]
      %v341 = vld [vmem:[%s206 + $0x3b0] sm:$0xff]
      %v342 = vld [vmem:[%s206 + $0x3b8] sm:$0xff]
      %v343 = vld [vmem:[%s206 + $0x3c0] sm:$0xff]
      %v344 = vld [vmem:[%s206 + $0x3c8] sm:$0xff]
      %v345 = vld [vmem:[%s206 + $0x3d0] sm:$0xff]
      %v346 = vld [vmem:[%s206 + $0x3d8] sm:$0xff]
      %v347 = vld [vmem:[%s206 + $0x3e0] sm:$0xff]
      %v348 = vld [vmem:[%s206 + $0x3e8] sm:$0xff]
      %v349 = vld [vmem:[%s206 + $0x3f0] sm:$0xff]
      %v350 = vld [vmem:[%s206 + $0x3f8] sm:$0xff]
      %v351 = vld [vmem:[%s210] sm:$0xf]
      %v352 = vld [vmem:[%s210 + $0x4] sm:$0xf]
      %v353 = vld [vmem:[%s210 + $0x8] sm:$0xf]
      %v354 = vld [vmem:[%s210 + $0xc] sm:$0xf]
      %v355 = vld [vmem:[%s210 + $0x10] sm:$0xf]
      %v356 = vld [vmem:[%s210 + $0x14] sm:$0xf]
      %v357 = vld [vmem:[%s210 + $0x18] sm:$0xf]
      %v358 = vld [vmem:[%s210 + $0x1c] sm:$0xf]
      %v359 = vld [vmem:[%s210 + $0x20] sm:$0xf]
      %v360 = vld [vmem:[%s210 + $0x24] sm:$0xf]
      %v361 = vld [vmem:[%s210 + $0x28] sm:$0xf]
      %v362 = vld [vmem:[%s210 + $0x2c] sm:$0xf]
      %v363 = vld [vmem:[%s210 + $0x30] sm:$0xf]
      %v364 = vld [vmem:[%s210 + $0x34] sm:$0xf]
      %v365 = vld [vmem:[%s210 + $0x38] sm:$0xf]
      %v366 = vld [vmem:[%s210 + $0x3c] sm:$0xf]
      %v367 = vld [vmem:[%s210 + $0x40] sm:$0xf]
      %v368 = vld [vmem:[%s210 + $0x44] sm:$0xf]
      %v369 = vld [vmem:[%s210 + $0x48] sm:$0x3]
      %v370 = vld [vmem:[%s213] sm:$0x1]
      %v372 = vperm.slane %v370, 0
      %v502 = vunpack.c.l.b16 %v223
      %v503 = vunpack.c.h.b16 %v223
      %v504 = vunpack.c.l.b16 %v224
      %v505 = vunpack.c.h.b16 %v224
      %v506 = vunpack.c.l.b16 %v225
      %v507 = vunpack.c.h.b16 %v225
      %v508 = vunpack.c.l.b16 %v226
      %v509 = vunpack.c.h.b16 %v226
      %v510 = vunpack.c.l.b16 %v227
      %v511 = vunpack.c.h.b16 %v227
      %v512 = vunpack.c.l.b16 %v228
      %v513 = vunpack.c.h.b16 %v228
      %v514 = vunpack.c.l.b16 %v229
      %v515 = vunpack.c.h.b16 %v229
      %v516 = vunpack.c.l.b16 %v230
      %v517 = vunpack.c.h.b16 %v230
      %v518 = vunpack.c.l.b16 %v231
      %v519 = vunpack.c.h.b16 %v231
      %v520 = vunpack.c.l.b16 %v232
      %v521 = vunpack.c.h.b16 %v232
      %v522 = vunpack.c.l.b16 %v233
      %v523 = vunpack.c.h.b16 %v233
      %v524 = vunpack.c.l.b16 %v234
      %v525 = vunpack.c.h.b16 %v234
      %v526 = vunpack.c.l.b16 %v235
      %v527 = vunpack.c.h.b16 %v235
      %v528 = vunpack.c.l.b16 %v236
      %v529 = vunpack.c.h.b16 %v236
      %v530 = vunpack.c.l.b16 %v237
      %v531 = vunpack.c.h.b16 %v237
      %v532 = vunpack.c.l.b16 %v238
      %v533 = vunpack.c.h.b16 %v238
      %v534 = vunpack.c.l.b16 %v239
      %v535 = vunpack.c.h.b16 %v239
      %v536 = vunpack.c.l.b16 %v240
      %v537 = vunpack.c.h.b16 %v240
      %v538 = vunpack.c.l.b16 %v241
      %v539 = vunpack.c.h.b16 %v241
      %v540 = vunpack.c.l.b16 %v242
      %v541 = vunpack.c.h.b16 %v242
      %v542 = vunpack.c.l.b16 %v243
      %v543 = vunpack.c.h.b16 %v243
      %v544 = vunpack.c.l.b16 %v244
      %v545 = vunpack.c.h.b16 %v244
      %v546 = vunpack.c.l.b16 %v245
      %v547 = vunpack.c.h.b16 %v245
      %v548 = vunpack.c.l.b16 %v246
      %v549 = vunpack.c.h.b16 %v246
      %v550 = vunpack.c.l.b16 %v247
      %v551 = vunpack.c.h.b16 %v247
      %v552 = vunpack.c.l.b16 %v248
      %v553 = vunpack.c.h.b16 %v248
      %v554 = vunpack.c.l.b16 %v249
      %v555 = vunpack.c.h.b16 %v249
      %v556 = vunpack.c.l.b16 %v250
      %v557 = vunpack.c.h.b16 %v250
      %v558 = vunpack.c.l.b16 %v251
      %v559 = vunpack.c.h.b16 %v251
      %v560 = vunpack.c.l.b16 %v252
      %v561 = vunpack.c.h.b16 %v252
      %v562 = vunpack.c.l.b16 %v253
      %v563 = vunpack.c.h.b16 %v253
      %v564 = vunpack.c.l.b16 %v254
      %v565 = vunpack.c.h.b16 %v254
      %v566 = vunpack.c.l.b16 %v255
      %v567 = vunpack.c.h.b16 %v255
      %v568 = vunpack.c.l.b16 %v256
      %v569 = vunpack.c.h.b16 %v256
      %v570 = vunpack.c.l.b16 %v257
      %v571 = vunpack.c.h.b16 %v257
      %v572 = vunpack.c.l.b16 %v258
      %v573 = vunpack.c.h.b16 %v258
      %v574 = vunpack.c.l.b16 %v259
      %v575 = vunpack.c.h.b16 %v259
      %v576 = vunpack.c.l.b16 %v260
      %v577 = vunpack.c.h.b16 %v260
      %v578 = vunpack.c.l.b16 %v261
      %v579 = vunpack.c.h.b16 %v261
      %v580 = vunpack.c.l.b16 %v262
      %v581 = vunpack.c.h.b16 %v262
      %v582 = vunpack.c.l.b16 %v263
      %v583 = vunpack.c.h.b16 %v263
      %v584 = vunpack.c.l.b16 %v264
      %v585 = vunpack.c.h.b16 %v264
      %v586 = vunpack.c.l.b16 %v265
      %v587 = vunpack.c.h.b16 %v265
      %v588 = vunpack.c.l.b16 %v266
      %v589 = vunpack.c.h.b16 %v266
      %v590 = vunpack.c.l.b16 %v267
      %v591 = vunpack.c.h.b16 %v267
      %v592 = vunpack.c.l.b16 %v268
      %v593 = vunpack.c.h.b16 %v268
      %v594 = vunpack.c.l.b16 %v269
      %v595 = vunpack.c.h.b16 %v269
      %v596 = vunpack.c.l.b16 %v270
      %v597 = vunpack.c.h.b16 %v270
      %v598 = vunpack.c.l.b16 %v271
      %v599 = vunpack.c.h.b16 %v271
      %v600 = vunpack.c.l.b16 %v272
      %v601 = vunpack.c.h.b16 %v272
      %v602 = vunpack.c.l.b16 %v273
      %v603 = vunpack.c.h.b16 %v273
      %v604 = vunpack.c.l.b16 %v274
      %v605 = vunpack.c.h.b16 %v274
      %v606 = vunpack.c.l.b16 %v275
      %v607 = vunpack.c.h.b16 %v275
      %v608 = vunpack.c.l.b16 %v276
      %v609 = vunpack.c.h.b16 %v276
      %v610 = vunpack.c.l.b16 %v277
      %v611 = vunpack.c.h.b16 %v277
      %v612 = vunpack.c.l.b16 %v278
      %v613 = vunpack.c.h.b16 %v278
      %v614 = vunpack.c.l.b16 %v279
      %v615 = vunpack.c.h.b16 %v279
      %v616 = vunpack.c.l.b16 %v280
      %v617 = vunpack.c.h.b16 %v280
      %v618 = vunpack.c.l.b16 %v281
      %v619 = vunpack.c.h.b16 %v281
      %v620 = vunpack.c.l.b16 %v282
      %v621 = vunpack.c.h.b16 %v282
      %v622 = vunpack.c.l.b16 %v283
      %v623 = vunpack.c.h.b16 %v283
      %v624 = vunpack.c.l.b16 %v284
      %v625 = vunpack.c.h.b16 %v284
      %v626 = vunpack.c.l.b16 %v285
      %v627 = vunpack.c.h.b16 %v285
      %v628 = vunpack.c.l.b16 %v286
      %v629 = vunpack.c.h.b16 %v286
      %v630 = vunpack.c.l.b16 %v287
      %v631 = vunpack.c.h.b16 %v287
      %v632 = vunpack.c.l.b16 %v288
      %v633 = vunpack.c.h.b16 %v288
      %v634 = vunpack.c.l.b16 %v289
      %v635 = vunpack.c.h.b16 %v289
      %v636 = vunpack.c.l.b16 %v290
      %v637 = vunpack.c.h.b16 %v290
      %v638 = vunpack.c.l.b16 %v291
      %v639 = vunpack.c.h.b16 %v291
      %v640 = vunpack.c.l.b16 %v292
      %v641 = vunpack.c.h.b16 %v292
      %v642 = vunpack.c.l.b16 %v293
      %v643 = vunpack.c.h.b16 %v293
      %v644 = vunpack.c.l.b16 %v294
      %v645 = vunpack.c.h.b16 %v294
      %v646 = vunpack.c.l.b16 %v295
      %v647 = vunpack.c.h.b16 %v295
      %v648 = vunpack.c.l.b16 %v296
      %v649 = vunpack.c.h.b16 %v296
      %v650 = vunpack.c.l.b16 %v297
      %v651 = vunpack.c.h.b16 %v297
      %v652 = vunpack.c.l.b16 %v298
      %v653 = vunpack.c.h.b16 %v298
      %v654 = vunpack.c.l.b16 %v299
      %v655 = vunpack.c.h.b16 %v299
      %v656 = vunpack.c.l.b16 %v300
      %v657 = vunpack.c.h.b16 %v300
      %v658 = vunpack.c.l.b16 %v301
      %v659 = vunpack.c.h.b16 %v301
      %v660 = vunpack.c.l.b16 %v302
      %v661 = vunpack.c.h.b16 %v302
      %v662 = vunpack.c.l.b16 %v303
      %v663 = vunpack.c.h.b16 %v303
      %v664 = vunpack.c.l.b16 %v304
      %v665 = vunpack.c.h.b16 %v304
      %v666 = vunpack.c.l.b16 %v305
      %v667 = vunpack.c.h.b16 %v305
      %v668 = vunpack.c.l.b16 %v306
      %v669 = vunpack.c.h.b16 %v306
      %v670 = vunpack.c.l.b16 %v307
      %v671 = vunpack.c.h.b16 %v307
      %v672 = vunpack.c.l.b16 %v308
      %v673 = vunpack.c.h.b16 %v308
      %v674 = vunpack.c.l.b16 %v309
      %v675 = vunpack.c.h.b16 %v309
      %v676 = vunpack.c.l.b16 %v310
      %v677 = vunpack.c.h.b16 %v310
      %v678 = vunpack.c.l.b16 %v311
      %v679 = vunpack.c.h.b16 %v311
      %v680 = vunpack.c.l.b16 %v312
      %v681 = vunpack.c.h.b16 %v312
      %v682 = vunpack.c.l.b16 %v313
      %v683 = vunpack.c.h.b16 %v313
      %v684 = vunpack.c.l.b16 %v314
      %v685 = vunpack.c.h.b16 %v314
      %v686 = vunpack.c.l.b16 %v315
      %v687 = vunpack.c.h.b16 %v315
      %v688 = vunpack.c.l.b16 %v316
      %v689 = vunpack.c.h.b16 %v316
      %v690 = vunpack.c.l.b16 %v317
      %v691 = vunpack.c.h.b16 %v317
      %v692 = vunpack.c.l.b16 %v318
      %v693 = vunpack.c.h.b16 %v318
      %v694 = vunpack.c.l.b16 %v319
      %v695 = vunpack.c.h.b16 %v319
      %v696 = vunpack.c.l.b16 %v320
      %v697 = vunpack.c.h.b16 %v320
      %v698 = vunpack.c.l.b16 %v321
      %v699 = vunpack.c.h.b16 %v321
      %v700 = vunpack.c.l.b16 %v322
      %v701 = vunpack.c.h.b16 %v322
      %v702 = vunpack.c.l.b16 %v323
      %v703 = vunpack.c.h.b16 %v323
      %v704 = vunpack.c.l.b16 %v324
      %v705 = vunpack.c.h.b16 %v324
      %v706 = vunpack.c.l.b16 %v325
      %v707 = vunpack.c.h.b16 %v325
      %v708 = vunpack.c.l.b16 %v326
      %v709 = vunpack.c.h.b16 %v326
      %v710 = vunpack.c.l.b16 %v327
      %v711 = vunpack.c.h.b16 %v327
      %v712 = vunpack.c.l.b16 %v328
      %v713 = vunpack.c.h.b16 %v328
      %v714 = vunpack.c.l.b16 %v329
      %v715 = vunpack.c.h.b16 %v329
      %v716 = vunpack.c.l.b16 %v330
      %v717 = vunpack.c.h.b16 %v330
      %v718 = vunpack.c.l.b16 %v331
      %v719 = vunpack.c.h.b16 %v331
      %v720 = vunpack.c.l.b16 %v332
      %v721 = vunpack.c.h.b16 %v332
      %v722 = vunpack.c.l.b16 %v333
      %v723 = vunpack.c.h.b16 %v333
      %v724 = vunpack.c.l.b16 %v334
      %v725 = vunpack.c.h.b16 %v334
      %v726 = vunpack.c.l.b16 %v335
      %v727 = vunpack.c.h.b16 %v335
      %v728 = vunpack.c.l.b16 %v336
      %v729 = vunpack.c.h.b16 %v336
      %v730 = vunpack.c.l.b16 %v337
      %v731 = vunpack.c.h.b16 %v337
      %v732 = vunpack.c.l.b16 %v338
      %v733 = vunpack.c.h.b16 %v338
      %v734 = vunpack.c.l.b16 %v339
      %v735 = vunpack.c.h.b16 %v339
      %v736 = vunpack.c.l.b16 %v340
      %v737 = vunpack.c.h.b16 %v340
      %v738 = vunpack.c.l.b16 %v341
      %v739 = vunpack.c.h.b16 %v341
      %v740 = vunpack.c.l.b16 %v342
      %v741 = vunpack.c.h.b16 %v342
      %v742 = vunpack.c.l.b16 %v343
      %v743 = vunpack.c.h.b16 %v343
      %v744 = vunpack.c.l.b16 %v344
      %v745 = vunpack.c.h.b16 %v344
      %v746 = vunpack.c.l.b16 %v345
      %v747 = vunpack.c.h.b16 %v345
      %v748 = vunpack.c.l.b16 %v346
      %v749 = vunpack.c.h.b16 %v346
      %v750 = vunpack.c.l.b16 %v347
      %v751 = vunpack.c.h.b16 %v347
      %v752 = vunpack.c.l.b16 %v348
      %v753 = vunpack.c.h.b16 %v348
      %v754 = vunpack.c.l.b16 %v349
      %v755 = vunpack.c.h.b16 %v349
      %v756 = vunpack.c.l.b16 %v350
      %v757 = vunpack.c.h.b16 %v350
      %v758 = vpack.c.b16 %v504, %v502
      %v759 = vpack.c.b16 %v505, %v503
      %v760 = vpack.c.b16 %v508, %v506
      %v761 = vpack.c.b16 %v509, %v507
      %v762 = vpack.c.b16 %v512, %v510
      %v763 = vpack.c.b16 %v513, %v511
      %v764 = vpack.c.b16 %v516, %v514
      %v765 = vpack.c.b16 %v517, %v515
      %v766 = vpack.c.b16 %v520, %v518
      %v767 = vpack.c.b16 %v521, %v519
      %v768 = vpack.c.b16 %v524, %v522
      %v769 = vpack.c.b16 %v525, %v523
      %v770 = vpack.c.b16 %v528, %v526
      %v771 = vpack.c.b16 %v529, %v527
      %v772 = vpack.c.b16 %v532, %v530
      %v773 = vpack.c.b16 %v533, %v531
      %v774 = vpack.c.b16 %v536, %v534
      %v775 = vpack.c.b16 %v537, %v535
      %v776 = vpack.c.b16 %v540, %v538
      %v777 = vpack.c.b16 %v541, %v539
      %v778 = vpack.c.b16 %v544, %v542
      %v779 = vpack.c.b16 %v545, %v543
      %v780 = vpack.c.b16 %v548, %v546
      %v781 = vpack.c.b16 %v549, %v547
      %v782 = vpack.c.b16 %v552, %v550
      %v783 = vpack.c.b16 %v553, %v551
      %v784 = vpack.c.b16 %v556, %v554
      %v785 = vpack.c.b16 %v557, %v555
      %v786 = vpack.c.b16 %v560, %v558
      %v787 = vpack.c.b16 %v561, %v559
      %v788 = vpack.c.b16 %v564, %v562
      %v789 = vpack.c.b16 %v565, %v563
      %v790 = vpack.c.b16 %v568, %v566
      %v791 = vpack.c.b16 %v569, %v567
      %v792 = vpack.c.b16 %v572, %v570
      %v793 = vpack.c.b16 %v573, %v571
      %v794 = vpack.c.b16 %v576, %v574
      %v795 = vpack.c.b16 %v577, %v575
      %v796 = vpack.c.b16 %v580, %v578
      %v797 = vpack.c.b16 %v581, %v579
      %v798 = vpack.c.b16 %v584, %v582
      %v799 = vpack.c.b16 %v585, %v583
      %v800 = vpack.c.b16 %v588, %v586
      %v801 = vpack.c.b16 %v589, %v587
      %v802 = vpack.c.b16 %v592, %v590
      %v803 = vpack.c.b16 %v593, %v591
      %v804 = vpack.c.b16 %v596, %v594
      %v805 = vpack.c.b16 %v597, %v595
      %v806 = vpack.c.b16 %v600, %v598
      %v807 = vpack.c.b16 %v601, %v599
      %v808 = vpack.c.b16 %v604, %v602
      %v809 = vpack.c.b16 %v605, %v603
      %v810 = vpack.c.b16 %v608, %v606
      %v811 = vpack.c.b16 %v609, %v607
      %v812 = vpack.c.b16 %v612, %v610
      %v813 = vpack.c.b16 %v613, %v611
      %v814 = vpack.c.b16 %v616, %v614
      %v815 = vpack.c.b16 %v617, %v615
      %v816 = vpack.c.b16 %v620, %v618
      %v817 = vpack.c.b16 %v621, %v619
      %v818 = vpack.c.b16 %v624, %v622
      %v819 = vpack.c.b16 %v625, %v623
      %v820 = vpack.c.b16 %v628, %v626
      %v821 = vpack.c.b16 %v629, %v627
      %v822 = vpack.c.b16 %v632, %v630
      %v823 = vpack.c.b16 %v633, %v631
      %v824 = vpack.c.b16 %v636, %v634
      %v825 = vpack.c.b16 %v637, %v635
      %v826 = vpack.c.b16 %v640, %v638
      %v827 = vpack.c.b16 %v641, %v639
      %v828 = vpack.c.b16 %v644, %v642
      %v829 = vpack.c.b16 %v645, %v643
      %v830 = vpack.c.b16 %v648, %v646
      %v831 = vpack.c.b16 %v649, %v647
      %v832 = vpack.c.b16 %v652, %v650
      %v833 = vpack.c.b16 %v653, %v651
      %v834 = vpack.c.b16 %v656, %v654
      %v835 = vpack.c.b16 %v657, %v655
      %v836 = vpack.c.b16 %v660, %v658
      %v837 = vpack.c.b16 %v661, %v659
      %v838 = vpack.c.b16 %v664, %v662
      %v839 = vpack.c.b16 %v665, %v663
      %v840 = vpack.c.b16 %v668, %v666
      %v841 = vpack.c.b16 %v669, %v667
      %v842 = vpack.c.b16 %v672, %v670
      %v843 = vpack.c.b16 %v673, %v671
      %v844 = vpack.c.b16 %v676, %v674
      %v845 = vpack.c.b16 %v677, %v675
      %v846 = vpack.c.b16 %v680, %v678
      %v847 = vpack.c.b16 %v681, %v679
      %v848 = vpack.c.b16 %v684, %v682
      %v849 = vpack.c.b16 %v685, %v683
      %v850 = vpack.c.b16 %v688, %v686
      %v851 = vpack.c.b16 %v689, %v687
      %v852 = vpack.c.b16 %v692, %v690
      %v853 = vpack.c.b16 %v693, %v691
      %v854 = vpack.c.b16 %v696, %v694
      %v855 = vpack.c.b16 %v697, %v695
      %v856 = vpack.c.b16 %v700, %v698
      %v857 = vpack.c.b16 %v701, %v699
      %v858 = vpack.c.b16 %v704, %v702
      %v859 = vpack.c.b16 %v705, %v703
      %v860 = vpack.c.b16 %v708, %v706
      %v861 = vpack.c.b16 %v709, %v707
      %v862 = vpack.c.b16 %v712, %v710
      %v863 = vpack.c.b16 %v713, %v711
      %v864 = vpack.c.b16 %v716, %v714
      %v865 = vpack.c.b16 %v717, %v715
      %v866 = vpack.c.b16 %v720, %v718
      %v867 = vpack.c.b16 %v721, %v719
      %v868 = vpack.c.b16 %v724, %v722
      %v869 = vpack.c.b16 %v725, %v723
      %v870 = vpack.c.b16 %v728, %v726
      %v871 = vpack.c.b16 %v729, %v727
      %v872 = vpack.c.b16 %v732, %v730
      %v873 = vpack.c.b16 %v733, %v731
      %v874 = vpack.c.b16 %v736, %v734
      %v875 = vpack.c.b16 %v737, %v735
      %v876 = vpack.c.b16 %v740, %v738
      %v877 = vpack.c.b16 %v741, %v739
      %v878 = vpack.c.b16 %v744, %v742
      %v879 = vpack.c.b16 %v745, %v743
      %v880 = vpack.c.b16 %v748, %v746
      %v881 = vpack.c.b16 %v749, %v747
      %v882 = vpack.c.b16 %v752, %v750
      %v883 = vpack.c.b16 %v753, %v751
      %v884 = vpack.c.b16 %v756, %v754
      %v885 = vpack.c.b16 %v757, %v755
      %v969 = vunpack.c.l.b16 %v351
      %v970 = vunpack.c.l.b16 %v352
      %v971 = vunpack.c.l.b16 %v353
      %v972 = vunpack.c.l.b16 %v354
      %v973 = vunpack.c.l.b16 %v355
      %v974 = vunpack.c.l.b16 %v356
      %v975 = vunpack.c.l.b16 %v357
      %v976 = vunpack.c.l.b16 %v358
      %v977 = vunpack.c.l.b16 %v359
      %v978 = vunpack.c.l.b16 %v360
      %v979 = vunpack.c.l.b16 %v361
      %v980 = vunpack.c.l.b16 %v362
      %v981 = vunpack.c.l.b16 %v363
      %v982 = vunpack.c.l.b16 %v364
      %v983 = vunpack.c.l.b16 %v365
      %v984 = vunpack.c.l.b16 %v366
      %v985 = vunpack.c.l.b16 %v367
      %v986 = vunpack.c.l.b16 %v368
      %v987 = vunpack.c.l.b16 %v369
      %v988 = vpack.c.b16 %v970, %v969
      %v989 = vpack.c.b16 %v972, %v971
      %v990 = vpack.c.b16 %v974, %v973
      %v991 = vpack.c.b16 %v976, %v975
      %v992 = vpack.c.b16 %v978, %v977
      %v993 = vpack.c.b16 %v980, %v979
      %v994 = vpack.c.b16 %v982, %v981
      %v995 = vpack.c.b16 %v984, %v983
      %v996 = vpack.c.b16 %v986, %v985
      %v997 = vpack.c.b16 %v987, %v987
      %vm1007 = vcmask 154624
      %v1009 = vsel %vm1007, %v759, 0
      %v1012 = vsel %vm1007, %v761, 0
      %v1015 = vsel %vm1007, %v763, 0
      %v1018 = vsel %vm1007, %v765, 0
      %v1021 = vsel %vm1007, %v767, 0
      %v1024 = vsel %vm1007, %v769, 0
      %v1027 = vsel %vm1007, %v771, 0
      %v1030 = vsel %vm1007, %v773, 0
      %v1033 = vsel %vm1007, %v775, 0
      %v1036 = vsel %vm1007, %v777, 0
      %v1039 = vsel %vm1007, %v779, 0
      %v1042 = vsel %vm1007, %v781, 0
      %v1045 = vsel %vm1007, %v783, 0
      %v1048 = vsel %vm1007, %v785, 0
      %v1051 = vsel %vm1007, %v787, 0
      %v1054 = vsel %vm1007, %v789, 0
      %v1057 = vsel %vm1007, %v791, 0
      %v1060 = vsel %vm1007, %v793, 0
      %v1063 = vsel %vm1007, %v795, 0
      %v1066 = vsel %vm1007, %v797, 0
      %v1069 = vsel %vm1007, %v799, 0
      %v1072 = vsel %vm1007, %v801, 0
      %v1075 = vsel %vm1007, %v803, 0
      %v1078 = vsel %vm1007, %v805, 0
      %v1081 = vsel %vm1007, %v807, 0
      %v1084 = vsel %vm1007, %v809, 0
      %v1087 = vsel %vm1007, %v811, 0
      %v1090 = vsel %vm1007, %v813, 0
      %v1093 = vsel %vm1007, %v815, 0
      %v1096 = vsel %vm1007, %v817, 0
      %v1099 = vsel %vm1007, %v819, 0
      %v1102 = vsel %vm1007, %v821, 0
      %v1105 = vsel %vm1007, %v823, 0
      %v1108 = vsel %vm1007, %v825, 0
      %v1111 = vsel %vm1007, %v827, 0
      %v1114 = vsel %vm1007, %v829, 0
      %v1117 = vsel %vm1007, %v831, 0
      %v1120 = vsel %vm1007, %v833, 0
      %v1123 = vsel %vm1007, %v835, 0
      %v1126 = vsel %vm1007, %v837, 0
      %v1129 = vsel %vm1007, %v839, 0
      %v1132 = vsel %vm1007, %v841, 0
      %v1135 = vsel %vm1007, %v843, 0
      %v1138 = vsel %vm1007, %v845, 0
      %v1141 = vsel %vm1007, %v847, 0
      %v1144 = vsel %vm1007, %v849, 0
      %v1147 = vsel %vm1007, %v851, 0
      %v1150 = vsel %vm1007, %v853, 0
      %v1153 = vsel %vm1007, %v855, 0
      %v1156 = vsel %vm1007, %v857, 0
      %v1159 = vsel %vm1007, %v859, 0
      %v1162 = vsel %vm1007, %v861, 0
      %v1165 = vsel %vm1007, %v863, 0
      %v1168 = vsel %vm1007, %v865, 0
      %v1171 = vsel %vm1007, %v867, 0
      %v1174 = vsel %vm1007, %v869, 0
      %v1177 = vsel %vm1007, %v871, 0
      %v1180 = vsel %vm1007, %v873, 0
      %v1183 = vsel %vm1007, %v875, 0
      %v1186 = vsel %vm1007, %v877, 0
      %v1189 = vsel %vm1007, %v879, 0
      %v1192 = vsel %vm1007, %v881, 0
      %v1195 = vsel %vm1007, %v883, 0
      %v1198 = vsel %vm1007, %v885, 0
      %vm1200 = vcmask 1040384
      %vm1201 = vcmask 1041408
      %v1202 = vsel %vm1200, 4294967295, 65535
      %v1203 = vsel %vm1201, %v1202, 0
      %v1205 = vand.u32 %v997, %v1203
      %1207 = vmatpush.bf16.msra.mxu0 %v995
      %1208 = vmatpush.bf16.msra.mxu0 %v994
      %1209 = vmatpush.bf16.msra.mxu0 %v993
      %1210 = vmatpush.bf16.msra.mxu0 %v992
      %1211 = vmatpush.bf16.msra.mxu0 %v991
      %1212 = vmatpush.bf16.msra.mxu0 %v990
      %1213 = vmatpush.bf16.msra.mxu0 %v989
      %1214 = vmatpush.bf16.msra.mxu0 %v988
      %1215 = vmatmul.bf16.gmra.mxu0 %v758
      %v1216 = vpop.f32.mrf.mxu0
      %v1217 = vadd.f32 %v372, %v1216
      %v1218 = vpop.f32.mrf.mxu0
      %v1219 = vadd.f32 %v372, %v1218
      %1220 = vmatmul.bf16.gmra.mxu0 %v760
      %v1221 = vpop.f32.mrf.mxu0
      %v1222 = vadd.f32 %v372, %v1221
      %v1223 = vpop.f32.mrf.mxu0
      %v1224 = vadd.f32 %v372, %v1223
      %1225 = vmatmul.bf16.gmra.mxu0 %v762
      %v1226 = vpop.f32.mrf.mxu0
      %v1227 = vadd.f32 %v372, %v1226
      %v1228 = vpop.f32.mrf.mxu0
      %v1229 = vadd.f32 %v372, %v1228
      %1230 = vmatmul.bf16.gmra.mxu0 %v764
      %v1231 = vpop.f32.mrf.mxu0
      %v1232 = vadd.f32 %v372, %v1231
      %v1233 = vpop.f32.mrf.mxu0
      %v1234 = vadd.f32 %v372, %v1233
      %1235 = vmatmul.bf16.gmra.mxu0 %v766
      %v1236 = vpop.f32.mrf.mxu0
      %v1237 = vadd.f32 %v372, %v1236
      %v1238 = vpop.f32.mrf.mxu0
      %v1239 = vadd.f32 %v372, %v1238
      %1240 = vmatmul.bf16.gmra.mxu0 %v768
      %v1241 = vpop.f32.mrf.mxu0
      %v1242 = vadd.f32 %v372, %v1241
      %v1243 = vpop.f32.mrf.mxu0
      %v1244 = vadd.f32 %v372, %v1243
      %1245 = vmatmul.bf16.gmra.mxu0 %v770
      %v1246 = vpop.f32.mrf.mxu0
      %v1247 = vadd.f32 %v372, %v1246
      %v1248 = vpop.f32.mrf.mxu0
      %v1249 = vadd.f32 %v372, %v1248
      %1250 = vmatmul.bf16.gmra.mxu0 %v772
      %v1251 = vpop.f32.mrf.mxu0
      %v1252 = vadd.f32 %v372, %v1251
      %v1253 = vpop.f32.mrf.mxu0
      %v1254 = vadd.f32 %v372, %v1253
      %1255 = vmatmul.bf16.gmra.mxu0 %v774
      %v1256 = vpop.f32.mrf.mxu0
      %v1257 = vadd.f32 %v372, %v1256
      %v1258 = vpop.f32.mrf.mxu0
      %v1259 = vadd.f32 %v372, %v1258
      %1260 = vmatmul.bf16.gmra.mxu0 %v776
      %v1261 = vpop.f32.mrf.mxu0
      %v1262 = vadd.f32 %v372, %v1261
      %v1263 = vpop.f32.mrf.mxu0
      %v1264 = vadd.f32 %v372, %v1263
      %1265 = vmatmul.bf16.gmra.mxu0 %v778
      %v1266 = vpop.f32.mrf.mxu0
      %v1267 = vadd.f32 %v372, %v1266
      %v1268 = vpop.f32.mrf.mxu0
      %v1269 = vadd.f32 %v372, %v1268
      %1270 = vmatmul.bf16.gmra.mxu0 %v780
      %v1271 = vpop.f32.mrf.mxu0
      %v1272 = vadd.f32 %v372, %v1271
      %v1273 = vpop.f32.mrf.mxu0
      %v1274 = vadd.f32 %v372, %v1273
      %1275 = vmatmul.bf16.gmra.mxu0 %v782
      %v1276 = vpop.f32.mrf.mxu0
      %v1277 = vadd.f32 %v372, %v1276
      %v1278 = vpop.f32.mrf.mxu0
      %v1279 = vadd.f32 %v372, %v1278
      %1280 = vmatmul.bf16.gmra.mxu0 %v784
      %v1281 = vpop.f32.mrf.mxu0
      %v1282 = vadd.f32 %v372, %v1281
      %v1283 = vpop.f32.mrf.mxu0
      %v1284 = vadd.f32 %v372, %v1283
      %1285 = vmatmul.bf16.gmra.mxu0 %v786
      %v1286 = vpop.f32.mrf.mxu0
      %v1287 = vadd.f32 %v372, %v1286
      %v1288 = vpop.f32.mrf.mxu0
      %v1289 = vadd.f32 %v372, %v1288
      %1290 = vmatmul.bf16.gmra.mxu0 %v788
      %v1291 = vpop.f32.mrf.mxu0
      %v1292 = vadd.f32 %v372, %v1291
      %v1293 = vpop.f32.mrf.mxu0
      %v1294 = vadd.f32 %v372, %v1293
      %1295 = vmatmul.bf16.gmra.mxu0 %v790
      %v1296 = vpop.f32.mrf.mxu0
      %v1297 = vadd.f32 %v372, %v1296
      %v1298 = vpop.f32.mrf.mxu0
      %v1299 = vadd.f32 %v372, %v1298
      %1300 = vmatmul.bf16.gmra.mxu0 %v792
      %v1301 = vpop.f32.mrf.mxu0
      %v1302 = vadd.f32 %v372, %v1301
      %v1303 = vpop.f32.mrf.mxu0
      %v1304 = vadd.f32 %v372, %v1303
      %1305 = vmatmul.bf16.gmra.mxu0 %v794
      %v1306 = vpop.f32.mrf.mxu0
      %v1307 = vadd.f32 %v372, %v1306
      %v1308 = vpop.f32.mrf.mxu0
      %v1309 = vadd.f32 %v372, %v1308
      %1310 = vmatmul.bf16.gmra.mxu0 %v796
      %v1311 = vpop.f32.mrf.mxu0
      %v1312 = vadd.f32 %v372, %v1311
      %v1313 = vpop.f32.mrf.mxu0
      %v1314 = vadd.f32 %v372, %v1313
      %1315 = vmatmul.bf16.gmra.mxu0 %v798
      %v1316 = vpop.f32.mrf.mxu0
      %v1317 = vadd.f32 %v372, %v1316
      %v1318 = vpop.f32.mrf.mxu0
      %v1319 = vadd.f32 %v372, %v1318
      %1320 = vmatmul.bf16.gmra.mxu0 %v800
      %v1321 = vpop.f32.mrf.mxu0
      %v1322 = vadd.f32 %v372, %v1321
      %v1323 = vpop.f32.mrf.mxu0
      %v1324 = vadd.f32 %v372, %v1323
      %1325 = vmatmul.bf16.gmra.mxu0 %v802
      %v1326 = vpop.f32.mrf.mxu0
      %v1327 = vadd.f32 %v372, %v1326
      %v1328 = vpop.f32.mrf.mxu0
      %v1329 = vadd.f32 %v372, %v1328
      %1330 = vmatmul.bf16.gmra.mxu0 %v804
      %v1331 = vpop.f32.mrf.mxu0
      %v1332 = vadd.f32 %v372, %v1331
      %v1333 = vpop.f32.mrf.mxu0
      %v1334 = vadd.f32 %v372, %v1333
      %1335 = vmatmul.bf16.gmra.mxu0 %v806
      %v1336 = vpop.f32.mrf.mxu0
      %v1337 = vadd.f32 %v372, %v1336
      %v1338 = vpop.f32.mrf.mxu0
      %v1339 = vadd.f32 %v372, %v1338
      %1340 = vmatmul.bf16.gmra.mxu0 %v808
      %v1341 = vpop.f32.mrf.mxu0
      %v1342 = vadd.f32 %v372, %v1341
      %v1343 = vpop.f32.mrf.mxu0
      %v1344 = vadd.f32 %v372, %v1343
      %1345 = vmatmul.bf16.gmra.mxu0 %v810
      %v1346 = vpop.f32.mrf.mxu0
      %v1347 = vadd.f32 %v372, %v1346
      %v1348 = vpop.f32.mrf.mxu0
      %v1349 = vadd.f32 %v372, %v1348
      %1350 = vmatmul.bf16.gmra.mxu0 %v812
      %v1351 = vpop.f32.mrf.mxu0
      %v1352 = vadd.f32 %v372, %v1351
      %v1353 = vpop.f32.mrf.mxu0
      %v1354 = vadd.f32 %v372, %v1353
      %1355 = vmatmul.bf16.gmra.mxu0 %v814
      %v1356 = vpop.f32.mrf.mxu0
      %v1357 = vadd.f32 %v372, %v1356
      %v1358 = vpop.f32.mrf.mxu0
      %v1359 = vadd.f32 %v372, %v1358
      %1360 = vmatmul.bf16.gmra.mxu0 %v816
      %v1361 = vpop.f32.mrf.mxu0
      %v1362 = vadd.f32 %v372, %v1361
      %v1363 = vpop.f32.mrf.mxu0
      %v1364 = vadd.f32 %v372, %v1363
      %1365 = vmatmul.bf16.gmra.mxu0 %v818
      %v1366 = vpop.f32.mrf.mxu0
      %v1367 = vadd.f32 %v372, %v1366
      %v1368 = vpop.f32.mrf.mxu0
      %v1369 = vadd.f32 %v372, %v1368
      %1370 = vmatmul.bf16.gmra.mxu0 %v820
      %v1371 = vpop.f32.mrf.mxu0
      %v1372 = vadd.f32 %v372, %v1371
      %v1373 = vpop.f32.mrf.mxu0
      %v1374 = vadd.f32 %v372, %v1373
      %1375 = vmatmul.bf16.gmra.mxu0 %v822
      %v1376 = vpop.f32.mrf.mxu0
      %v1377 = vadd.f32 %v372, %v1376
      %v1378 = vpop.f32.mrf.mxu0
      %v1379 = vadd.f32 %v372, %v1378
      %1380 = vmatmul.bf16.gmra.mxu0 %v824
      %v1381 = vpop.f32.mrf.mxu0
      %v1382 = vadd.f32 %v372, %v1381
      %v1383 = vpop.f32.mrf.mxu0
      %v1384 = vadd.f32 %v372, %v1383
      %1385 = vmatmul.bf16.gmra.mxu0 %v826
      %v1386 = vpop.f32.mrf.mxu0
      %v1387 = vadd.f32 %v372, %v1386
      %v1388 = vpop.f32.mrf.mxu0
      %v1389 = vadd.f32 %v372, %v1388
      %1390 = vmatmul.bf16.gmra.mxu0 %v828
      %v1391 = vpop.f32.mrf.mxu0
      %v1392 = vadd.f32 %v372, %v1391
      %v1393 = vpop.f32.mrf.mxu0
      %v1394 = vadd.f32 %v372, %v1393
      %1395 = vmatmul.bf16.gmra.mxu0 %v830
      %v1396 = vpop.f32.mrf.mxu0
      %v1397 = vadd.f32 %v372, %v1396
      %v1398 = vpop.f32.mrf.mxu0
      %v1399 = vadd.f32 %v372, %v1398
      %1400 = vmatmul.bf16.gmra.mxu0 %v832
      %v1401 = vpop.f32.mrf.mxu0
      %v1402 = vadd.f32 %v372, %v1401
      %v1403 = vpop.f32.mrf.mxu0
      %v1404 = vadd.f32 %v372, %v1403
      %1405 = vmatmul.bf16.gmra.mxu0 %v834
      %v1406 = vpop.f32.mrf.mxu0
      %v1407 = vadd.f32 %v372, %v1406
      %v1408 = vpop.f32.mrf.mxu0
      %v1409 = vadd.f32 %v372, %v1408
      %1410 = vmatmul.bf16.gmra.mxu0 %v836
      %v1411 = vpop.f32.mrf.mxu0
      %v1412 = vadd.f32 %v372, %v1411
      %v1413 = vpop.f32.mrf.mxu0
      %v1414 = vadd.f32 %v372, %v1413
      %1415 = vmatmul.bf16.gmra.mxu0 %v838
      %v1416 = vpop.f32.mrf.mxu0
      %v1417 = vadd.f32 %v372, %v1416
      %v1418 = vpop.f32.mrf.mxu0
      %v1419 = vadd.f32 %v372, %v1418
      %1420 = vmatmul.bf16.gmra.mxu0 %v840
      %v1421 = vpop.f32.mrf.mxu0
      %v1422 = vadd.f32 %v372, %v1421
      %v1423 = vpop.f32.mrf.mxu0
      %v1424 = vadd.f32 %v372, %v1423
      %1425 = vmatmul.bf16.gmra.mxu0 %v842
      %v1426 = vpop.f32.mrf.mxu0
      %v1427 = vadd.f32 %v372, %v1426
      %v1428 = vpop.f32.mrf.mxu0
      %v1429 = vadd.f32 %v372, %v1428
      %1430 = vmatmul.bf16.gmra.mxu0 %v844
      %v1431 = vpop.f32.mrf.mxu0
      %v1432 = vadd.f32 %v372, %v1431
      %v1433 = vpop.f32.mrf.mxu0
      %v1434 = vadd.f32 %v372, %v1433
      %1435 = vmatmul.bf16.gmra.mxu0 %v846
      %v1436 = vpop.f32.mrf.mxu0
      %v1437 = vadd.f32 %v372, %v1436
      %v1438 = vpop.f32.mrf.mxu0
      %v1439 = vadd.f32 %v372, %v1438
      %1440 = vmatmul.bf16.gmra.mxu0 %v848
      %v1441 = vpop.f32.mrf.mxu0
      %v1442 = vadd.f32 %v372, %v1441
      %v1443 = vpop.f32.mrf.mxu0
      %v1444 = vadd.f32 %v372, %v1443
      %1445 = vmatmul.bf16.gmra.mxu0 %v850
      %v1446 = vpop.f32.mrf.mxu0
      %v1447 = vadd.f32 %v372, %v1446
      %v1448 = vpop.f32.mrf.mxu0
      %v1449 = vadd.f32 %v372, %v1448
      %1450 = vmatmul.bf16.gmra.mxu0 %v852
      %v1451 = vpop.f32.mrf.mxu0
      %v1452 = vadd.f32 %v372, %v1451
      %v1453 = vpop.f32.mrf.mxu0
      %v1454 = vadd.f32 %v372, %v1453
      %1455 = vmatmul.bf16.gmra.mxu0 %v854
      %v1456 = vpop.f32.mrf.mxu0
      %v1457 = vadd.f32 %v372, %v1456
      %v1458 = vpop.f32.mrf.mxu0
      %v1459 = vadd.f32 %v372, %v1458
      %1460 = vmatmul.bf16.gmra.mxu0 %v856
      %v1461 = vpop.f32.mrf.mxu0
      %v1462 = vadd.f32 %v372, %v1461
      %v1463 = vpop.f32.mrf.mxu0
      %v1464 = vadd.f32 %v372, %v1463
      %1465 = vmatmul.bf16.gmra.mxu0 %v858
      %v1466 = vpop.f32.mrf.mxu0
      %v1467 = vadd.f32 %v372, %v1466
      %v1468 = vpop.f32.mrf.mxu0
      %v1469 = vadd.f32 %v372, %v1468
      %1470 = vmatmul.bf16.gmra.mxu0 %v860
      %v1471 = vpop.f32.mrf.mxu0
      %v1472 = vadd.f32 %v372, %v1471
      %v1473 = vpop.f32.mrf.mxu0
      %v1474 = vadd.f32 %v372, %v1473
      %1475 = vmatmul.bf16.gmra.mxu0 %v862
      %v1476 = vpop.f32.mrf.mxu0
      %v1477 = vadd.f32 %v372, %v1476
      %v1478 = vpop.f32.mrf.mxu0
      %v1479 = vadd.f32 %v372, %v1478
      %1480 = vmatmul.bf16.gmra.mxu0 %v864
      %v1481 = vpop.f32.mrf.mxu0
      %v1482 = vadd.f32 %v372, %v1481
      %v1483 = vpop.f32.mrf.mxu0
      %v1484 = vadd.f32 %v372, %v1483
      %1485 = vmatmul.bf16.gmra.mxu0 %v866
      %v1486 = vpop.f32.mrf.mxu0
      %v1487 = vadd.f32 %v372, %v1486
      %v1488 = vpop.f32.mrf.mxu0
      %v1489 = vadd.f32 %v372, %v1488
      %1490 = vmatmul.bf16.gmra.mxu0 %v868
      %v1491 = vpop.f32.mrf.mxu0
      %v1492 = vadd.f32 %v372, %v1491
      %v1493 = vpop.f32.mrf.mxu0
      %v1494 = vadd.f32 %v372, %v1493
      %1495 = vmatmul.bf16.gmra.mxu0 %v870
      %v1496 = vpop.f32.mrf.mxu0
      %v1497 = vadd.f32 %v372, %v1496
      %v1498 = vpop.f32.mrf.mxu0
      %v1499 = vadd.f32 %v372, %v1498
      %1500 = vmatmul.bf16.gmra.mxu0 %v872
      %v1501 = vpop.f32.mrf.mxu0
      %v1502 = vadd.f32 %v372, %v1501
      %v1503 = vpop.f32.mrf.mxu0
      %v1504 = vadd.f32 %v372, %v1503
      %1505 = vmatmul.bf16.gmra.mxu0 %v874
      %v1506 = vpop.f32.mrf.mxu0
      %v1507 = vadd.f32 %v372, %v1506
      %v1508 = vpop.f32.mrf.mxu0
      %v1509 = vadd.f32 %v372, %v1508
      %1510 = vmatmul.bf16.gmra.mxu0 %v876
      %v1511 = vpop.f32.mrf.mxu0
      %v1512 = vadd.f32 %v372, %v1511
      %v1513 = vpop.f32.mrf.mxu0
      %v1514 = vadd.f32 %v372, %v1513
      %1515 = vmatmul.bf16.gmra.mxu0 %v878
      %v1516 = vpop.f32.mrf.mxu0
      %v1517 = vadd.f32 %v372, %v1516
      %v1518 = vpop.f32.mrf.mxu0
      %v1519 = vadd.f32 %v372, %v1518
      %1520 = vmatmul.bf16.gmra.mxu0 %v880
      %v1521 = vpop.f32.mrf.mxu0
      %v1522 = vadd.f32 %v372, %v1521
      %v1523 = vpop.f32.mrf.mxu0
      %v1524 = vadd.f32 %v372, %v1523
      %1525 = vmatmul.bf16.gmra.mxu0 %v882
      %v1526 = vpop.f32.mrf.mxu0
      %v1527 = vadd.f32 %v372, %v1526
      %v1528 = vpop.f32.mrf.mxu0
      %v1529 = vadd.f32 %v372, %v1528
      %1530 = vmatmul.bf16.gmra.mxu0 %v884
      %v1531 = vpop.f32.mrf.mxu0
      %v1532 = vadd.f32 %v372, %v1531
      %v1533 = vpop.f32.mrf.mxu0
      %v1534 = vadd.f32 %v372, %v1533
      %1535 = vdwg.mxu0
      %1536 = vmatpush.bf16.msra.mxu0 0
      %1537 = vmatpush.bf16.msra.mxu0 0
      %1538 = vmatpush.bf16.msra.mxu0 0
      %1539 = vmatpush.bf16.msra.mxu0 0
      %1540 = vmatpush.bf16.msra.mxu0 0
      %1541 = vmatpush.bf16.msra.mxu0 0
      %1542 = vmatpush.bf16.msra.mxu0 %v1205
      %1543 = vmatpush.bf16.msra.mxu0 %v996
      %1544 = vmatmul.bf16.gmra.mxu0 %v1009
      %v1545 = vpop.f32.mrf.mxu0
      %v1546 = vadd.f32 %v1217, %v1545
      %v1547 = vpop.f32.mrf.mxu0
      %v1548 = vadd.f32 %v1219, %v1547
      %1549 = vmatmul.bf16.gmra.mxu0 %v1012
      %v1550 = vpop.f32.mrf.mxu0
      %v1551 = vadd.f32 %v1222, %v1550
      %v1552 = vpop.f32.mrf.mxu0
      %v1553 = vadd.f32 %v1224, %v1552
      %1554 = vmatmul.bf16.gmra.mxu0 %v1015
      %v1555 = vpop.f32.mrf.mxu0
      %v1556 = vadd.f32 %v1227, %v1555
      %v1557 = vpop.f32.mrf.mxu0
      %v1558 = vadd.f32 %v1229, %v1557
      %1559 = vmatmul.bf16.gmra.mxu0 %v1018
      %v1560 = vpop.f32.mrf.mxu0
      %v1561 = vadd.f32 %v1232, %v1560
      %v1562 = vpop.f32.mrf.mxu0
      %v1563 = vadd.f32 %v1234, %v1562
      %1564 = vmatmul.bf16.gmra.mxu0 %v1021
      %v1565 = vpop.f32.mrf.mxu0
      %v1566 = vadd.f32 %v1237, %v1565
      %v1567 = vpop.f32.mrf.mxu0
      %v1568 = vadd.f32 %v1239, %v1567
      %1569 = vmatmul.bf16.gmra.mxu0 %v1024
      %v1570 = vpop.f32.mrf.mxu0
      %v1571 = vadd.f32 %v1242, %v1570
      %v1572 = vpop.f32.mrf.mxu0
      %v1573 = vadd.f32 %v1244, %v1572
      %1574 = vmatmul.bf16.gmra.mxu0 %v1027
      %v1575 = vpop.f32.mrf.mxu0
      %v1576 = vadd.f32 %v1247, %v1575
      %v1577 = vpop.f32.mrf.mxu0
      %v1578 = vadd.f32 %v1249, %v1577
      %1579 = vmatmul.bf16.gmra.mxu0 %v1030
      %v1580 = vpop.f32.mrf.mxu0
      %v1581 = vadd.f32 %v1252, %v1580
      %v1582 = vpop.f32.mrf.mxu0
      %v1583 = vadd.f32 %v1254, %v1582
      %1584 = vmatmul.bf16.gmra.mxu0 %v1033
      %v1585 = vpop.f32.mrf.mxu0
      %v1586 = vadd.f32 %v1257, %v1585
      %v1587 = vpop.f32.mrf.mxu0
      %v1588 = vadd.f32 %v1259, %v1587
      %1589 = vmatmul.bf16.gmra.mxu0 %v1036
      %v1590 = vpop.f32.mrf.mxu0
      %v1591 = vadd.f32 %v1262, %v1590
      %v1592 = vpop.f32.mrf.mxu0
      %v1593 = vadd.f32 %v1264, %v1592
      %1594 = vmatmul.bf16.gmra.mxu0 %v1039
      %v1595 = vpop.f32.mrf.mxu0
      %v1596 = vadd.f32 %v1267, %v1595
      %v1597 = vpop.f32.mrf.mxu0
      %v1598 = vadd.f32 %v1269, %v1597
      %1599 = vmatmul.bf16.gmra.mxu0 %v1042
      %v1600 = vpop.f32.mrf.mxu0
      %v1601 = vadd.f32 %v1272, %v1600
      %v1602 = vpop.f32.mrf.mxu0
      %v1603 = vadd.f32 %v1274, %v1602
      %1604 = vmatmul.bf16.gmra.mxu0 %v1045
      %v1605 = vpop.f32.mrf.mxu0
      %v1606 = vadd.f32 %v1277, %v1605
      %v1607 = vpop.f32.mrf.mxu0
      %v1608 = vadd.f32 %v1279, %v1607
      %1609 = vmatmul.bf16.gmra.mxu0 %v1048
      %v1610 = vpop.f32.mrf.mxu0
      %v1611 = vadd.f32 %v1282, %v1610
      %v1612 = vpop.f32.mrf.mxu0
      %v1613 = vadd.f32 %v1284, %v1612
      %1614 = vmatmul.bf16.gmra.mxu0 %v1051
      %v1615 = vpop.f32.mrf.mxu0
      %v1616 = vadd.f32 %v1287, %v1615
      %v1617 = vpop.f32.mrf.mxu0
      %v1618 = vadd.f32 %v1289, %v1617
      %1619 = vmatmul.bf16.gmra.mxu0 %v1054
      %v1620 = vpop.f32.mrf.mxu0
      %v1621 = vadd.f32 %v1292, %v1620
      %v1622 = vpop.f32.mrf.mxu0
      %v1623 = vadd.f32 %v1294, %v1622
      %1624 = vmatmul.bf16.gmra.mxu0 %v1057
      %v1625 = vpop.f32.mrf.mxu0
      %v1626 = vadd.f32 %v1297, %v1625
      %v1627 = vpop.f32.mrf.mxu0
      %v1628 = vadd.f32 %v1299, %v1627
      %1629 = vmatmul.bf16.gmra.mxu0 %v1060
      %v1630 = vpop.f32.mrf.mxu0
      %v1631 = vadd.f32 %v1302, %v1630
      %v1632 = vpop.f32.mrf.mxu0
      %v1633 = vadd.f32 %v1304, %v1632
      %1634 = vmatmul.bf16.gmra.mxu0 %v1063
      %v1635 = vpop.f32.mrf.mxu0
      %v1636 = vadd.f32 %v1307, %v1635
      %v1637 = vpop.f32.mrf.mxu0
      %v1638 = vadd.f32 %v1309, %v1637
      %1639 = vmatmul.bf16.gmra.mxu0 %v1066
      %v1640 = vpop.f32.mrf.mxu0
      %v1641 = vadd.f32 %v1312, %v1640
      %v1642 = vpop.f32.mrf.mxu0
      %v1643 = vadd.f32 %v1314, %v1642
      %1644 = vmatmul.bf16.gmra.mxu0 %v1069
      %v1645 = vpop.f32.mrf.mxu0
      %v1646 = vadd.f32 %v1317, %v1645
      %v1647 = vpop.f32.mrf.mxu0
      %v1648 = vadd.f32 %v1319, %v1647
      %1649 = vmatmul.bf16.gmra.mxu0 %v1072
      %v1650 = vpop.f32.mrf.mxu0
      %v1651 = vadd.f32 %v1322, %v1650
      %v1652 = vpop.f32.mrf.mxu0
      %v1653 = vadd.f32 %v1324, %v1652
      %1654 = vmatmul.bf16.gmra.mxu0 %v1075
      %v1655 = vpop.f32.mrf.mxu0
      %v1656 = vadd.f32 %v1327, %v1655
      %v1657 = vpop.f32.mrf.mxu0
      %v1658 = vadd.f32 %v1329, %v1657
      %1659 = vmatmul.bf16.gmra.mxu0 %v1078
      %v1660 = vpop.f32.mrf.mxu0
      %v1661 = vadd.f32 %v1332, %v1660
      %v1662 = vpop.f32.mrf.mxu0
      %v1663 = vadd.f32 %v1334, %v1662
      %1664 = vmatmul.bf16.gmra.mxu0 %v1081
      %v1665 = vpop.f32.mrf.mxu0
      %v1666 = vadd.f32 %v1337, %v1665
      %v1667 = vpop.f32.mrf.mxu0
      %v1668 = vadd.f32 %v1339, %v1667
      %1669 = vmatmul.bf16.gmra.mxu0 %v1084
      %v1670 = vpop.f32.mrf.mxu0
      %v1671 = vadd.f32 %v1342, %v1670
      %v1672 = vpop.f32.mrf.mxu0
      %v1673 = vadd.f32 %v1344, %v1672
      %1674 = vmatmul.bf16.gmra.mxu0 %v1087
      %v1675 = vpop.f32.mrf.mxu0
      %v1676 = vadd.f32 %v1347, %v1675
      %v1677 = vpop.f32.mrf.mxu0
      %v1678 = vadd.f32 %v1349, %v1677
      %1679 = vmatmul.bf16.gmra.mxu0 %v1090
      %v1680 = vpop.f32.mrf.mxu0
      %v1681 = vadd.f32 %v1352, %v1680
      %v1682 = vpop.f32.mrf.mxu0
      %v1683 = vadd.f32 %v1354, %v1682
      %1684 = vmatmul.bf16.gmra.mxu0 %v1093
      %v1685 = vpop.f32.mrf.mxu0
      %v1686 = vadd.f32 %v1357, %v1685
      %v1687 = vpop.f32.mrf.mxu0
      %v1688 = vadd.f32 %v1359, %v1687
      %1689 = vmatmul.bf16.gmra.mxu0 %v1096
      %v1690 = vpop.f32.mrf.mxu0
      %v1691 = vadd.f32 %v1362, %v1690
      %v1692 = vpop.f32.mrf.mxu0
      %v1693 = vadd.f32 %v1364, %v1692
      %1694 = vmatmul.bf16.gmra.mxu0 %v1099
      %v1695 = vpop.f32.mrf.mxu0
      %v1696 = vadd.f32 %v1367, %v1695
      %v1697 = vpop.f32.mrf.mxu0
      %v1698 = vadd.f32 %v1369, %v1697
      %1699 = vmatmul.bf16.gmra.mxu0 %v1102
      %v1700 = vpop.f32.mrf.mxu0
      %v1701 = vadd.f32 %v1372, %v1700
      %v1702 = vpop.f32.mrf.mxu0
      %v1703 = vadd.f32 %v1374, %v1702
      %1704 = vmatmul.bf16.gmra.mxu0 %v1105
      %v1705 = vpop.f32.mrf.mxu0
      %v1706 = vadd.f32 %v1377, %v1705
      %v1707 = vpop.f32.mrf.mxu0
      %v1708 = vadd.f32 %v1379, %v1707
      %1709 = vmatmul.bf16.gmra.mxu0 %v1108
      %v1710 = vpop.f32.mrf.mxu0
      %v1711 = vadd.f32 %v1382, %v1710
      %v1712 = vpop.f32.mrf.mxu0
      %v1713 = vadd.f32 %v1384, %v1712
      %1714 = vmatmul.bf16.gmra.mxu0 %v1111
      %v1715 = vpop.f32.mrf.mxu0
      %v1716 = vadd.f32 %v1387, %v1715
      %v1717 = vpop.f32.mrf.mxu0
      %v1718 = vadd.f32 %v1389, %v1717
      %1719 = vmatmul.bf16.gmra.mxu0 %v1114
      %v1720 = vpop.f32.mrf.mxu0
      %v1721 = vadd.f32 %v1392, %v1720
      %v1722 = vpop.f32.mrf.mxu0
      %v1723 = vadd.f32 %v1394, %v1722
      %1724 = vmatmul.bf16.gmra.mxu0 %v1117
      %v1725 = vpop.f32.mrf.mxu0
      %v1726 = vadd.f32 %v1397, %v1725
      %v1727 = vpop.f32.mrf.mxu0
      %v1728 = vadd.f32 %v1399, %v1727
      %1729 = vmatmul.bf16.gmra.mxu0 %v1120
      %v1730 = vpop.f32.mrf.mxu0
      %v1731 = vadd.f32 %v1402, %v1730
      %v1732 = vpop.f32.mrf.mxu0
      %v1733 = vadd.f32 %v1404, %v1732
      %1734 = vmatmul.bf16.gmra.mxu0 %v1123
      %v1735 = vpop.f32.mrf.mxu0
      %v1736 = vadd.f32 %v1407, %v1735
      %v1737 = vpop.f32.mrf.mxu0
      %v1738 = vadd.f32 %v1409, %v1737
      %1739 = vmatmul.bf16.gmra.mxu0 %v1126
      %v1740 = vpop.f32.mrf.mxu0
      %v1741 = vadd.f32 %v1412, %v1740
      %v1742 = vpop.f32.mrf.mxu0
      %v1743 = vadd.f32 %v1414, %v1742
      %1744 = vmatmul.bf16.gmra.mxu0 %v1129
      %v1745 = vpop.f32.mrf.mxu0
      %v1746 = vadd.f32 %v1417, %v1745
      %v1747 = vpop.f32.mrf.mxu0
      %v1748 = vadd.f32 %v1419, %v1747
      %1749 = vmatmul.bf16.gmra.mxu0 %v1132
      %v1750 = vpop.f32.mrf.mxu0
      %v1751 = vadd.f32 %v1422, %v1750
      %v1752 = vpop.f32.mrf.mxu0
      %v1753 = vadd.f32 %v1424, %v1752
      %1754 = vmatmul.bf16.gmra.mxu0 %v1135
      %v1755 = vpop.f32.mrf.mxu0
      %v1756 = vadd.f32 %v1427, %v1755
      %v1757 = vpop.f32.mrf.mxu0
      %v1758 = vadd.f32 %v1429, %v1757
      %1759 = vmatmul.bf16.gmra.mxu0 %v1138
      %v1760 = vpop.f32.mrf.mxu0
      %v1761 = vadd.f32 %v1432, %v1760
      %v1762 = vpop.f32.mrf.mxu0
      %v1763 = vadd.f32 %v1434, %v1762
      %1764 = vmatmul.bf16.gmra.mxu0 %v1141
      %v1765 = vpop.f32.mrf.mxu0
      %v1766 = vadd.f32 %v1437, %v1765
      %v1767 = vpop.f32.mrf.mxu0
      %v1768 = vadd.f32 %v1439, %v1767
      %1769 = vmatmul.bf16.gmra.mxu0 %v1144
      %v1770 = vpop.f32.mrf.mxu0
      %v1771 = vadd.f32 %v1442, %v1770
      %v1772 = vpop.f32.mrf.mxu0
      %v1773 = vadd.f32 %v1444, %v1772
      %1774 = vmatmul.bf16.gmra.mxu0 %v1147
      %v1775 = vpop.f32.mrf.mxu0
      %v1776 = vadd.f32 %v1447, %v1775
      %v1777 = vpop.f32.mrf.mxu0
      %v1778 = vadd.f32 %v1449, %v1777
      %1779 = vmatmul.bf16.gmra.mxu0 %v1150
      %v1780 = vpop.f32.mrf.mxu0
      %v1781 = vadd.f32 %v1452, %v1780
      %v1782 = vpop.f32.mrf.mxu0
      %v1783 = vadd.f32 %v1454, %v1782
      %1784 = vmatmul.bf16.gmra.mxu0 %v1153
      %v1785 = vpop.f32.mrf.mxu0
      %v1786 = vadd.f32 %v1457, %v1785
      %v1787 = vpop.f32.mrf.mxu0
      %v1788 = vadd.f32 %v1459, %v1787
      %1789 = vmatmul.bf16.gmra.mxu0 %v1156
      %v1790 = vpop.f32.mrf.mxu0
      %v1791 = vadd.f32 %v1462, %v1790
      %v1792 = vpop.f32.mrf.mxu0
      %v1793 = vadd.f32 %v1464, %v1792
      %1794 = vmatmul.bf16.gmra.mxu0 %v1159
      %v1795 = vpop.f32.mrf.mxu0
      %v1796 = vadd.f32 %v1467, %v1795
      %v1797 = vpop.f32.mrf.mxu0
      %v1798 = vadd.f32 %v1469, %v1797
      %1799 = vmatmul.bf16.gmra.mxu0 %v1162
      %v1800 = vpop.f32.mrf.mxu0
      %v1801 = vadd.f32 %v1472, %v1800
      %v1802 = vpop.f32.mrf.mxu0
      %v1803 = vadd.f32 %v1474, %v1802
      %1804 = vmatmul.bf16.gmra.mxu0 %v1165
      %v1805 = vpop.f32.mrf.mxu0
      %v1806 = vadd.f32 %v1477, %v1805
      %v1807 = vpop.f32.mrf.mxu0
      %v1808 = vadd.f32 %v1479, %v1807
      %1809 = vmatmul.bf16.gmra.mxu0 %v1168
      %v1810 = vpop.f32.mrf.mxu0
      %v1811 = vadd.f32 %v1482, %v1810
      %v1812 = vpop.f32.mrf.mxu0
      %v1813 = vadd.f32 %v1484, %v1812
      %1814 = vmatmul.bf16.gmra.mxu0 %v1171
      %v1815 = vpop.f32.mrf.mxu0
      %v1816 = vadd.f32 %v1487, %v1815
      %v1817 = vpop.f32.mrf.mxu0
      %v1818 = vadd.f32 %v1489, %v1817
      %1819 = vmatmul.bf16.gmra.mxu0 %v1174
      %v1820 = vpop.f32.mrf.mxu0
      %v1821 = vadd.f32 %v1492, %v1820
      %v1822 = vpop.f32.mrf.mxu0
      %v1823 = vadd.f32 %v1494, %v1822
      %1824 = vmatmul.bf16.gmra.mxu0 %v1177
      %v1825 = vpop.f32.mrf.mxu0
      %v1826 = vadd.f32 %v1497, %v1825
      %v1827 = vpop.f32.mrf.mxu0
      %v1828 = vadd.f32 %v1499, %v1827
      %1829 = vmatmul.bf16.gmra.mxu0 %v1180
      %v1830 = vpop.f32.mrf.mxu0
      %v1831 = vadd.f32 %v1502, %v1830
      %v1832 = vpop.f32.mrf.mxu0
      %v1833 = vadd.f32 %v1504, %v1832
      %1834 = vmatmul.bf16.gmra.mxu0 %v1183
      %v1835 = vpop.f32.mrf.mxu0
      %v1836 = vadd.f32 %v1507, %v1835
      %v1837 = vpop.f32.mrf.mxu0
      %v1838 = vadd.f32 %v1509, %v1837
      %1839 = vmatmul.bf16.gmra.mxu0 %v1186
      %v1840 = vpop.f32.mrf.mxu0
      %v1841 = vadd.f32 %v1512, %v1840
      %v1842 = vpop.f32.mrf.mxu0
      %v1843 = vadd.f32 %v1514, %v1842
      %1844 = vmatmul.bf16.gmra.mxu0 %v1189
      %v1845 = vpop.f32.mrf.mxu0
      %v1846 = vadd.f32 %v1517, %v1845
      %v1847 = vpop.f32.mrf.mxu0
      %v1848 = vadd.f32 %v1519, %v1847
      %1849 = vmatmul.bf16.gmra.mxu0 %v1192
      %v1850 = vpop.f32.mrf.mxu0
      %v1851 = vadd.f32 %v1522, %v1850
      %v1852 = vpop.f32.mrf.mxu0
      %v1853 = vadd.f32 %v1524, %v1852
      %1854 = vmatmul.bf16.gmra.mxu0 %v1195
      %v1855 = vpop.f32.mrf.mxu0
      %v1856 = vadd.f32 %v1527, %v1855
      %v1857 = vpop.f32.mrf.mxu0
      %v1858 = vadd.f32 %v1529, %v1857
      %1859 = vmatmul.bf16.gmra.mxu0 %v1198
      %v1860 = vpop.f32.mrf.mxu0
      %v1861 = vadd.f32 %v1532, %v1860
      %v1862 = vpop.f32.mrf.mxu0
      %v1863 = vadd.f32 %v1534, %v1862
      %1864 = vdwg.mxu0
      %v1865 = vmax.f32 %v1546, 0.0
      %v1866 = vmax.f32 %v1548, 0.0
      %v1867 = vmax.f32 %v1551, 0.0
      %v1868 = vmax.f32 %v1553, 0.0
      %v1869 = vmax.f32 %v1556, 0.0
      %v1870 = vmax.f32 %v1558, 0.0
      %v1871 = vmax.f32 %v1561, 0.0
      %v1872 = vmax.f32 %v1563, 0.0
      %v1873 = vmax.f32 %v1566, 0.0
      %v1874 = vmax.f32 %v1568, 0.0
      %v1875 = vmax.f32 %v1571, 0.0
      %v1876 = vmax.f32 %v1573, 0.0
      %v1877 = vmax.f32 %v1576, 0.0
      %v1878 = vmax.f32 %v1578, 0.0
      %v1879 = vmax.f32 %v1581, 0.0
      %v1880 = vmax.f32 %v1583, 0.0
      %v1881 = vmax.f32 %v1586, 0.0
      %v1882 = vmax.f32 %v1588, 0.0
      %v1883 = vmax.f32 %v1591, 0.0
      %v1884 = vmax.f32 %v1593, 0.0
      %v1885 = vmax.f32 %v1596, 0.0
      %v1886 = vmax.f32 %v1598, 0.0
      %v1887 = vmax.f32 %v1601, 0.0
      %v1888 = vmax.f32 %v1603, 0.0
      %v1889 = vmax.f32 %v1606, 0.0
      %v1890 = vmax.f32 %v1608, 0.0
      %v1891 = vmax.f32 %v1611, 0.0
      %v1892 = vmax.f32 %v1613, 0.0
      %v1893 = vmax.f32 %v1616, 0.0
      %v1894 = vmax.f32 %v1618, 0.0
      %v1895 = vmax.f32 %v1621, 0.0
      %v1896 = vmax.f32 %v1623, 0.0
      %v1897 = vmax.f32 %v1626, 0.0
      %v1898 = vmax.f32 %v1628, 0.0
      %v1899 = vmax.f32 %v1631, 0.0
      %v1900 = vmax.f32 %v1633, 0.0
      %v1901 = vmax.f32 %v1636, 0.0
      %v1902 = vmax.f32 %v1638, 0.0
      %v1903 = vmax.f32 %v1641, 0.0
      %v1904 = vmax.f32 %v1643, 0.0
      %v1905 = vmax.f32 %v1646, 0.0
      %v1906 = vmax.f32 %v1648, 0.0
      %v1907 = vmax.f32 %v1651, 0.0
      %v1908 = vmax.f32 %v1653, 0.0
      %v1909 = vmax.f32 %v1656, 0.0
      %v1910 = vmax.f32 %v1658, 0.0
      %v1911 = vmax.f32 %v1661, 0.0
      %v1912 = vmax.f32 %v1663, 0.0
      %v1913 = vmax.f32 %v1666, 0.0
      %v1914 = vmax.f32 %v1668, 0.0
      %v1915 = vmax.f32 %v1671, 0.0
      %v1916 = vmax.f32 %v1673, 0.0
      %v1917 = vmax.f32 %v1676, 0.0
      %v1918 = vmax.f32 %v1678, 0.0
      %v1919 = vmax.f32 %v1681, 0.0
      %v1920 = vmax.f32 %v1683, 0.0
      %v1921 = vmax.f32 %v1686, 0.0
      %v1922 = vmax.f32 %v1688, 0.0
      %v1923 = vmax.f32 %v1691, 0.0
      %v1924 = vmax.f32 %v1693, 0.0
      %v1925 = vmax.f32 %v1696, 0.0
      %v1926 = vmax.f32 %v1698, 0.0
      %v1927 = vmax.f32 %v1701, 0.0
      %v1928 = vmax.f32 %v1703, 0.0
      %v1929 = vmax.f32 %v1706, 0.0
      %v1930 = vmax.f32 %v1708, 0.0
      %v1931 = vmax.f32 %v1711, 0.0
      %v1932 = vmax.f32 %v1713, 0.0
      %v1933 = vmax.f32 %v1716, 0.0
      %v1934 = vmax.f32 %v1718, 0.0
      %v1935 = vmax.f32 %v1721, 0.0
      %v1936 = vmax.f32 %v1723, 0.0
      %v1937 = vmax.f32 %v1726, 0.0
      %v1938 = vmax.f32 %v1728, 0.0
      %v1939 = vmax.f32 %v1731, 0.0
      %v1940 = vmax.f32 %v1733, 0.0
      %v1941 = vmax.f32 %v1736, 0.0
      %v1942 = vmax.f32 %v1738, 0.0
      %v1943 = vmax.f32 %v1741, 0.0
      %v1944 = vmax.f32 %v1743, 0.0
      %v1945 = vmax.f32 %v1746, 0.0
      %v1946 = vmax.f32 %v1748, 0.0
      %v1947 = vmax.f32 %v1751, 0.0
      %v1948 = vmax.f32 %v1753, 0.0
      %v1949 = vmax.f32 %v1756, 0.0
      %v1950 = vmax.f32 %v1758, 0.0
      %v1951 = vmax.f32 %v1761, 0.0
      %v1952 = vmax.f32 %v1763, 0.0
      %v1953 = vmax.f32 %v1766, 0.0
      %v1954 = vmax.f32 %v1768, 0.0
      %v1955 = vmax.f32 %v1771, 0.0
      %v1956 = vmax.f32 %v1773, 0.0
      %v1957 = vmax.f32 %v1776, 0.0
      %v1958 = vmax.f32 %v1778, 0.0
      %v1959 = vmax.f32 %v1781, 0.0
      %v1960 = vmax.f32 %v1783, 0.0
      %v1961 = vmax.f32 %v1786, 0.0
      %v1962 = vmax.f32 %v1788, 0.0
      %v1963 = vmax.f32 %v1791, 0.0
      %v1964 = vmax.f32 %v1793, 0.0
      %v1965 = vmax.f32 %v1796, 0.0
      %v1966 = vmax.f32 %v1798, 0.0
      %v1967 = vmax.f32 %v1801, 0.0
      %v1968 = vmax.f32 %v1803, 0.0
      %v1969 = vmax.f32 %v1806, 0.0
      %v1970 = vmax.f32 %v1808, 0.0
      %v1971 = vmax.f32 %v1811, 0.0
      %v1972 = vmax.f32 %v1813, 0.0
      %v1973 = vmax.f32 %v1816, 0.0
      %v1974 = vmax.f32 %v1818, 0.0
      %v1975 = vmax.f32 %v1821, 0.0
      %v1976 = vmax.f32 %v1823, 0.0
      %v1977 = vmax.f32 %v1826, 0.0
      %v1978 = vmax.f32 %v1828, 0.0
      %v1979 = vmax.f32 %v1831, 0.0
      %v1980 = vmax.f32 %v1833, 0.0
      %v1981 = vmax.f32 %v1836, 0.0
      %v1982 = vmax.f32 %v1838, 0.0
      %v1983 = vmax.f32 %v1841, 0.0
      %v1984 = vmax.f32 %v1843, 0.0
      %v1985 = vmax.f32 %v1846, 0.0
      %v1986 = vmax.f32 %v1848, 0.0
      %v1987 = vmax.f32 %v1851, 0.0
      %v1988 = vmax.f32 %v1853, 0.0
      %v1989 = vmax.f32 %v1856, 0.0
      %v1990 = vmax.f32 %v1858, 0.0
      %v1991 = vmax.f32 %v1861, 0.0
      %v1992 = vmax.f32 %v1863, 0.0
      %v1993 = vpack.c.bf16 %v1865, %v1865
      %v1994 = vpack.c.bf16 %v1866, %v1866
      %v1995 = vpack.c.bf16 %v1867, %v1867
      %v1996 = vpack.c.bf16 %v1868, %v1868
      %v1997 = vpack.c.bf16 %v1869, %v1869
      %v1998 = vpack.c.bf16 %v1870, %v1870
      %v1999 = vpack.c.bf16 %v1871, %v1871
      %v2000 = vpack.c.bf16 %v1872, %v1872
      %v2001 = vpack.c.bf16 %v1873, %v1873
      %v2002 = vpack.c.bf16 %v1874, %v1874
      %v2003 = vpack.c.bf16 %v1875, %v1875
      %v2004 = vpack.c.bf16 %v1876, %v1876
      %v2005 = vpack.c.bf16 %v1877, %v1877
      %v2006 = vpack.c.bf16 %v1878, %v1878
      %v2007 = vpack.c.bf16 %v1879, %v1879
      %v2008 = vpack.c.bf16 %v1880, %v1880
      %v2009 = vpack.c.bf16 %v1881, %v1881
      %v2010 = vpack.c.bf16 %v1882, %v1882
      %v2011 = vpack.c.bf16 %v1883, %v1883
      %v2012 = vpack.c.bf16 %v1884, %v1884
      %v2013 = vpack.c.bf16 %v1885, %v1885
      %v2014 = vpack.c.bf16 %v1886, %v1886
      %v2015 = vpack.c.bf16 %v1887, %v1887
      %v2016 = vpack.c.bf16 %v1888, %v1888
      %v2017 = vpack.c.bf16 %v1889, %v1889
      %v2018 = vpack.c.bf16 %v1890, %v1890
      %v2019 = vpack.c.bf16 %v1891, %v1891
      %v2020 = vpack.c.bf16 %v1892, %v1892
      %v2021 = vpack.c.bf16 %v1893, %v1893
      %v2022 = vpack.c.bf16 %v1894, %v1894
      %v2023 = vpack.c.bf16 %v1895, %v1895
      %v2024 = vpack.c.bf16 %v1896, %v1896
      %v2025 = vpack.c.bf16 %v1897, %v1897
      %v2026 = vpack.c.bf16 %v1898, %v1898
      %v2027 = vpack.c.bf16 %v1899, %v1899
      %v2028 = vpack.c.bf16 %v1900, %v1900
      %v2029 = vpack.c.bf16 %v1901, %v1901
      %v2030 = vpack.c.bf16 %v1902, %v1902
      %v2031 = vpack.c.bf16 %v1903, %v1903
      %v2032 = vpack.c.bf16 %v1904, %v1904
      %v2033 = vpack.c.bf16 %v1905, %v1905
      %v2034 = vpack.c.bf16 %v1906, %v1906
      %v2035 = vpack.c.bf16 %v1907, %v1907
      %v2036 = vpack.c.bf16 %v1908, %v1908
      %v2037 = vpack.c.bf16 %v1909, %v1909
      %v2038 = vpack.c.bf16 %v1910, %v1910
      %v2039 = vpack.c.bf16 %v1911, %v1911
      %v2040 = vpack.c.bf16 %v1912, %v1912
      %v2041 = vpack.c.bf16 %v1913, %v1913
      %v2042 = vpack.c.bf16 %v1914, %v1914
      %v2043 = vpack.c.bf16 %v1915, %v1915
      %v2044 = vpack.c.bf16 %v1916, %v1916
      %v2045 = vpack.c.bf16 %v1917, %v1917
      %v2046 = vpack.c.bf16 %v1918, %v1918
      %v2047 = vpack.c.bf16 %v1919, %v1919
      %v2048 = vpack.c.bf16 %v1920, %v1920
      %v2049 = vpack.c.bf16 %v1921, %v1921
      %v2050 = vpack.c.bf16 %v1922, %v1922
      %v2051 = vpack.c.bf16 %v1923, %v1923
      %v2052 = vpack.c.bf16 %v1924, %v1924
      %v2053 = vpack.c.bf16 %v1925, %v1925
      %v2054 = vpack.c.bf16 %v1926, %v1926
      %v2055 = vpack.c.bf16 %v1927, %v1927
      %v2056 = vpack.c.bf16 %v1928, %v1928
      %v2057 = vpack.c.bf16 %v1929, %v1929
      %v2058 = vpack.c.bf16 %v1930, %v1930
      %v2059 = vpack.c.bf16 %v1931, %v1931
      %v2060 = vpack.c.bf16 %v1932, %v1932
      %v2061 = vpack.c.bf16 %v1933, %v1933
      %v2062 = vpack.c.bf16 %v1934, %v1934
      %v2063 = vpack.c.bf16 %v1935, %v1935
      %v2064 = vpack.c.bf16 %v1936, %v1936
      %v2065 = vpack.c.bf16 %v1937, %v1937
      %v2066 = vpack.c.bf16 %v1938, %v1938
      %v2067 = vpack.c.bf16 %v1939, %v1939
      %v2068 = vpack.c.bf16 %v1940, %v1940
      %v2069 = vpack.c.bf16 %v1941, %v1941
      %v2070 = vpack.c.bf16 %v1942, %v1942
      %v2071 = vpack.c.bf16 %v1943, %v1943
      %v2072 = vpack.c.bf16 %v1944, %v1944
      %v2073 = vpack.c.bf16 %v1945, %v1945
      %v2074 = vpack.c.bf16 %v1946, %v1946
      %v2075 = vpack.c.bf16 %v1947, %v1947
      %v2076 = vpack.c.bf16 %v1948, %v1948
      %v2077 = vpack.c.bf16 %v1949, %v1949
      %v2078 = vpack.c.bf16 %v1950, %v1950
      %v2079 = vpack.c.bf16 %v1951, %v1951
      %v2080 = vpack.c.bf16 %v1952, %v1952
      %v2081 = vpack.c.bf16 %v1953, %v1953
      %v2082 = vpack.c.bf16 %v1954, %v1954
      %v2083 = vpack.c.bf16 %v1955, %v1955
      %v2084 = vpack.c.bf16 %v1956, %v1956
      %v2085 = vpack.c.bf16 %v1957, %v1957
      %v2086 = vpack.c.bf16 %v1958, %v1958
      %v2087 = vpack.c.bf16 %v1959, %v1959
      %v2088 = vpack.c.bf16 %v1960, %v1960
      %v2089 = vpack.c.bf16 %v1961, %v1961
      %v2090 = vpack.c.bf16 %v1962, %v1962
      %v2091 = vpack.c.bf16 %v1963, %v1963
      %v2092 = vpack.c.bf16 %v1964, %v1964
      %v2093 = vpack.c.bf16 %v1965, %v1965
      %v2094 = vpack.c.bf16 %v1966, %v1966
      %v2095 = vpack.c.bf16 %v1967, %v1967
      %v2096 = vpack.c.bf16 %v1968, %v1968
      %v2097 = vpack.c.bf16 %v1969, %v1969
      %v2098 = vpack.c.bf16 %v1970, %v1970
      %v2099 = vpack.c.bf16 %v1971, %v1971
      %v2100 = vpack.c.bf16 %v1972, %v1972
      %v2101 = vpack.c.bf16 %v1973, %v1973
      %v2102 = vpack.c.bf16 %v1974, %v1974
      %v2103 = vpack.c.bf16 %v1975, %v1975
      %v2104 = vpack.c.bf16 %v1976, %v1976
      %v2105 = vpack.c.bf16 %v1977, %v1977
      %v2106 = vpack.c.bf16 %v1978, %v1978
      %v2107 = vpack.c.bf16 %v1979, %v1979
      %v2108 = vpack.c.bf16 %v1980, %v1980
      %v2109 = vpack.c.bf16 %v1981, %v1981
      %v2110 = vpack.c.bf16 %v1982, %v1982
      %v2111 = vpack.c.bf16 %v1983, %v1983
      %v2112 = vpack.c.bf16 %v1984, %v1984
      %v2113 = vpack.c.bf16 %v1985, %v1985
      %v2114 = vpack.c.bf16 %v1986, %v1986
      %v2115 = vpack.c.bf16 %v1987, %v1987
      %v2116 = vpack.c.bf16 %v1988, %v1988
      %v2117 = vpack.c.bf16 %v1989, %v1989
      %v2118 = vpack.c.bf16 %v1990, %v1990
      %v2119 = vpack.c.bf16 %v1991, %v1991
      %v2120 = vpack.c.bf16 %v1992, %v1992
      %vm2121 = vcmask 519168
      %2122 = vst.msk [vmem:[%s221] sm:$0xf] %vm2121, %v1993
      %2123 = vst.msk [vmem:[%s221 + $0x4] sm:$0xf] %vm2121, %v1994
      %2124 = vst.msk [vmem:[%s221 + $0x8] sm:$0xf] %vm2121, %v1995
      %2125 = vst.msk [vmem:[%s221 + $0xc] sm:$0xf] %vm2121, %v1996
      %2126 = vst.msk [vmem:[%s221 + $0x10] sm:$0xf] %vm2121, %v1997
      %2127 = vst.msk [vmem:[%s221 + $0x14] sm:$0xf] %vm2121, %v1998
      %2128 = vst.msk [vmem:[%s221 + $0x18] sm:$0xf] %vm2121, %v1999
      %2129 = vst.msk [vmem:[%s221 + $0x1c] sm:$0xf] %vm2121, %v2000
      %2130 = vst.msk [vmem:[%s221 + $0x20] sm:$0xf] %vm2121, %v2001
      %2131 = vst.msk [vmem:[%s221 + $0x24] sm:$0xf] %vm2121, %v2002
      %2132 = vst.msk [vmem:[%s221 + $0x28] sm:$0xf] %vm2121, %v2003
      %2133 = vst.msk [vmem:[%s221 + $0x2c] sm:$0xf] %vm2121, %v2004
      %2134 = vst.msk [vmem:[%s221 + $0x30] sm:$0xf] %vm2121, %v2005
      %2135 = vst.msk [vmem:[%s221 + $0x34] sm:$0xf] %vm2121, %v2006
      %2136 = vst.msk [vmem:[%s221 + $0x38] sm:$0xf] %vm2121, %v2007
      %2137 = vst.msk [vmem:[%s221 + $0x3c] sm:$0xf] %vm2121, %v2008
      %2138 = vst.msk [vmem:[%s221 + $0x40] sm:$0xf] %vm2121, %v2009
      %2139 = vst.msk [vmem:[%s221 + $0x44] sm:$0xf] %vm2121, %v2010
      %2140 = vst.msk [vmem:[%s221 + $0x48] sm:$0xf] %vm2121, %v2011
      %2141 = vst.msk [vmem:[%s221 + $0x4c] sm:$0xf] %vm2121, %v2012
      %2142 = vst.msk [vmem:[%s221 + $0x50] sm:$0xf] %vm2121, %v2013
      %2143 = vst.msk [vmem:[%s221 + $0x54] sm:$0xf] %vm2121, %v2014
      %2144 = vst.msk [vmem:[%s221 + $0x58] sm:$0xf] %vm2121, %v2015
      %2145 = vst.msk [vmem:[%s221 + $0x5c] sm:$0xf] %vm2121, %v2016
      %2146 = vst.msk [vmem:[%s221 + $0x60] sm:$0xf] %vm2121, %v2017
      %2147 = vst.msk [vmem:[%s221 + $0x64] sm:$0xf] %vm2121, %v2018
      %2148 = vst.msk [vmem:[%s221 + $0x68] sm:$0xf] %vm2121, %v2019
      %2149 = vst.msk [vmem:[%s221 + $0x6c] sm:$0xf] %vm2121, %v2020
      %2150 = vst.msk [vmem:[%s221 + $0x70] sm:$0xf] %vm2121, %v2021
      %2151 = vst.msk [vmem:[%s221 + $0x74] sm:$0xf] %vm2121, %v2022
      %2152 = vst.msk [vmem:[%s221 + $0x78] sm:$0xf] %vm2121, %v2023
      %2153 = vst.msk [vmem:[%s221 + $0x7c] sm:$0xf] %vm2121, %v2024
      %2154 = vst.msk [vmem:[%s221 + $0x80] sm:$0xf] %vm2121, %v2025
      %2155 = vst.msk [vmem:[%s221 + $0x84] sm:$0xf] %vm2121, %v2026
      %2156 = vst.msk [vmem:[%s221 + $0x88] sm:$0xf] %vm2121, %v2027
      %2157 = vst.msk [vmem:[%s221 + $0x8c] sm:$0xf] %vm2121, %v2028
      %2158 = vst.msk [vmem:[%s221 + $0x90] sm:$0xf] %vm2121, %v2029
      %2159 = vst.msk [vmem:[%s221 + $0x94] sm:$0xf] %vm2121, %v2030
      %2160 = vst.msk [vmem:[%s221 + $0x98] sm:$0xf] %vm2121, %v2031
      %2161 = vst.msk [vmem:[%s221 + $0x9c] sm:$0xf] %vm2121, %v2032
      %2162 = vst.msk [vmem:[%s221 + $0xa0] sm:$0xf] %vm2121, %v2033
      %2163 = vst.msk [vmem:[%s221 + $0xa4] sm:$0xf] %vm2121, %v2034
      %2164 = vst.msk [vmem:[%s221 + $0xa8] sm:$0xf] %vm2121, %v2035
      %2165 = vst.msk [vmem:[%s221 + $0xac] sm:$0xf] %vm2121, %v2036
      %2166 = vst.msk [vmem:[%s221 + $0xb0] sm:$0xf] %vm2121, %v2037
      %2167 = vst.msk [vmem:[%s221 + $0xb4] sm:$0xf] %vm2121, %v2038
      %2168 = vst.msk [vmem:[%s221 + $0xb8] sm:$0xf] %vm2121, %v2039
      %2169 = vst.msk [vmem:[%s221 + $0xbc] sm:$0xf] %vm2121, %v2040
      %2170 = vst.msk [vmem:[%s221 + $0xc0] sm:$0xf] %vm2121, %v2041
      %2171 = vst.msk [vmem:[%s221 + $0xc4] sm:$0xf] %vm2121, %v2042
      %2172 = vst.msk [vmem:[%s221 + $0xc8] sm:$0xf] %vm2121, %v2043
      %2173 = vst.msk [vmem:[%s221 + $0xcc] sm:$0xf] %vm2121, %v2044
      %2174 = vst.msk [vmem:[%s221 + $0xd0] sm:$0xf] %vm2121, %v2045
      %2175 = vst.msk [vmem:[%s221 + $0xd4] sm:$0xf] %vm2121, %v2046
      %2176 = vst.msk [vmem:[%s221 + $0xd8] sm:$0xf] %vm2121, %v2047
      %2177 = vst.msk [vmem:[%s221 + $0xdc] sm:$0xf] %vm2121, %v2048
      %2178 = vst.msk [vmem:[%s221 + $0xe0] sm:$0xf] %vm2121, %v2049
      %2179 = vst.msk [vmem:[%s221 + $0xe4] sm:$0xf] %vm2121, %v2050
      %2180 = vst.msk [vmem:[%s221 + $0xe8] sm:$0xf] %vm2121, %v2051
      %2181 = vst.msk [vmem:[%s221 + $0xec] sm:$0xf] %vm2121, %v2052
      %2182 = vst.msk [vmem:[%s221 + $0xf0] sm:$0xf] %vm2121, %v2053
      %2183 = vst.msk [vmem:[%s221 + $0xf4] sm:$0xf] %vm2121, %v2054
      %2184 = vst.msk [vmem:[%s221 + $0xf8] sm:$0xf] %vm2121, %v2055
      %2185 = vst.msk [vmem:[%s221 + $0xfc] sm:$0xf] %vm2121, %v2056
      %2186 = vst.msk [vmem:[%s221 + $0x100] sm:$0xf] %vm2121, %v2057
      %2187 = vst.msk [vmem:[%s221 + $0x104] sm:$0xf] %vm2121, %v2058
      %2188 = vst.msk [vmem:[%s221 + $0x108] sm:$0xf] %vm2121, %v2059
      %2189 = vst.msk [vmem:[%s221 + $0x10c] sm:$0xf] %vm2121, %v2060
      %2190 = vst.msk [vmem:[%s221 + $0x110] sm:$0xf] %vm2121, %v2061
      %2191 = vst.msk [vmem:[%s221 + $0x114] sm:$0xf] %vm2121, %v2062
      %2192 = vst.msk [vmem:[%s221 + $0x118] sm:$0xf] %vm2121, %v2063
      %2193 = vst.msk [vmem:[%s221 + $0x11c] sm:$0xf] %vm2121, %v2064
      %2194 = vst.msk [vmem:[%s221 + $0x120] sm:$0xf] %vm2121, %v2065
      %2195 = vst.msk [vmem:[%s221 + $0x124] sm:$0xf] %vm2121, %v2066
      %2196 = vst.msk [vmem:[%s221 + $0x128] sm:$0xf] %vm2121, %v2067
      %2197 = vst.msk [vmem:[%s221 + $0x12c] sm:$0xf] %vm2121, %v2068
      %2198 = vst.msk [vmem:[%s221 + $0x130] sm:$0xf] %vm2121, %v2069
      %2199 = vst.msk [vmem:[%s221 + $0x134] sm:$0xf] %vm2121, %v2070
      %2200 = vst.msk [vmem:[%s221 + $0x138] sm:$0xf] %vm2121, %v2071
      %2201 = vst.msk [vmem:[%s221 + $0x13c] sm:$0xf] %vm2121, %v2072
      %2202 = vst.msk [vmem:[%s221 + $0x140] sm:$0xf] %vm2121, %v2073
      %2203 = vst.msk [vmem:[%s221 + $0x144] sm:$0xf] %vm2121, %v2074
      %2204 = vst.msk [vmem:[%s221 + $0x148] sm:$0xf] %vm2121, %v2075
      %2205 = vst.msk [vmem:[%s221 + $0x14c] sm:$0xf] %vm2121, %v2076
      %2206 = vst.msk [vmem:[%s221 + $0x150] sm:$0xf] %vm2121, %v2077
      %2207 = vst.msk [vmem:[%s221 + $0x154] sm:$0xf] %vm2121, %v2078
      %2208 = vst.msk [vmem:[%s221 + $0x158] sm:$0xf] %vm2121, %v2079
      %2209 = vst.msk [vmem:[%s221 + $0x15c] sm:$0xf] %vm2121, %v2080
      %2210 = vst.msk [vmem:[%s221 + $0x160] sm:$0xf] %vm2121, %v2081
      %2211 = vst.msk [vmem:[%s221 + $0x164] sm:$0xf] %vm2121, %v2082
      %2212 = vst.msk [vmem:[%s221 + $0x168] sm:$0xf] %vm2121, %v2083
      %2213 = vst.msk [vmem:[%s221 + $0x16c] sm:$0xf] %vm2121, %v2084
      %2214 = vst.msk [vmem:[%s221 + $0x170] sm:$0xf] %vm2121, %v2085
      %2215 = vst.msk [vmem:[%s221 + $0x174] sm:$0xf] %vm2121, %v2086
      %2216 = vst.msk [vmem:[%s221 + $0x178] sm:$0xf] %vm2121, %v2087
      %2217 = vst.msk [vmem:[%s221 + $0x17c] sm:$0xf] %vm2121, %v2088
      %2218 = vst.msk [vmem:[%s221 + $0x180] sm:$0xf] %vm2121, %v2089
      %2219 = vst.msk [vmem:[%s221 + $0x184] sm:$0xf] %vm2121, %v2090
      %2220 = vst.msk [vmem:[%s221 + $0x188] sm:$0xf] %vm2121, %v2091
      %2221 = vst.msk [vmem:[%s221 + $0x18c] sm:$0xf] %vm2121, %v2092
      %2222 = vst.msk [vmem:[%s221 + $0x190] sm:$0xf] %vm2121, %v2093
      %2223 = vst.msk [vmem:[%s221 + $0x194] sm:$0xf] %vm2121, %v2094
      %2224 = vst.msk [vmem:[%s221 + $0x198] sm:$0xf] %vm2121, %v2095
      %2225 = vst.msk [vmem:[%s221 + $0x19c] sm:$0xf] %vm2121, %v2096
      %2226 = vst.msk [vmem:[%s221 + $0x1a0] sm:$0xf] %vm2121, %v2097
      %2227 = vst.msk [vmem:[%s221 + $0x1a4] sm:$0xf] %vm2121, %v2098
      %2228 = vst.msk [vmem:[%s221 + $0x1a8] sm:$0xf] %vm2121, %v2099
      %2229 = vst.msk [vmem:[%s221 + $0x1ac] sm:$0xf] %vm2121, %v2100
      %2230 = vst.msk [vmem:[%s221 + $0x1b0] sm:$0xf] %vm2121, %v2101
      %2231 = vst.msk [vmem:[%s221 + $0x1b4] sm:$0xf] %vm2121, %v2102
      %2232 = vst.msk [vmem:[%s221 + $0x1b8] sm:$0xf] %vm2121, %v2103
      %2233 = vst.msk [vmem:[%s221 + $0x1bc] sm:$0xf] %vm2121, %v2104
      %2234 = vst.msk [vmem:[%s221 + $0x1c0] sm:$0xf] %vm2121, %v2105
      %2235 = vst.msk [vmem:[%s221 + $0x1c4] sm:$0xf] %vm2121, %v2106
      %2236 = vst.msk [vmem:[%s221 + $0x1c8] sm:$0xf] %vm2121, %v2107
      %2237 = vst.msk [vmem:[%s221 + $0x1cc] sm:$0xf] %vm2121, %v2108
      %2238 = vst.msk [vmem:[%s221 + $0x1d0] sm:$0xf] %vm2121, %v2109
      %2239 = vst.msk [vmem:[%s221 + $0x1d4] sm:$0xf] %vm2121, %v2110
      %2240 = vst.msk [vmem:[%s221 + $0x1d8] sm:$0xf] %vm2121, %v2111
      %2241 = vst.msk [vmem:[%s221 + $0x1dc] sm:$0xf] %vm2121, %v2112
      %2242 = vst.msk [vmem:[%s221 + $0x1e0] sm:$0xf] %vm2121, %v2113
      %2243 = vst.msk [vmem:[%s221 + $0x1e4] sm:$0xf] %vm2121, %v2114
      %2244 = vst.msk [vmem:[%s221 + $0x1e8] sm:$0xf] %vm2121, %v2115
      %2245 = vst.msk [vmem:[%s221 + $0x1ec] sm:$0xf] %vm2121, %v2116
      %2246 = vst.msk [vmem:[%s221 + $0x1f0] sm:$0xf] %vm2121, %v2117
      %2247 = vst.msk [vmem:[%s221 + $0x1f4] sm:$0xf] %vm2121, %v2118
      %2248 = vst.msk [vmem:[%s221 + $0x1f8] sm:$0xf] %vm2121, %v2119
      %2249 = vst.msk [vmem:[%s221 + $0x1fc] sm:$0xf] %vm2121, %v2120
      %p2250 = scmp.lt.s32.totalorder %s18, 1
      %s2251 = scalar_select %p2250, %s18, 1
      %p2252 = scmp.lt.s32.totalorder %s19, 0
      %s2253 = scalar_select %p2252, %s19, 0
      %s2254 = smul.addr %s2251, 128
      %s2255 = sadd.s32 %s2253, %s2254
      %s2256 = smul.addr %s2255, 4
      %s2257 = scalar_lea.vmem %s3, %s2256
      // Predicated region
      $region33: #{tpu_custom_call.1} parent=31 // pred_check
        %p2258 = pneg %p124
      $region34: #{tpu_custom_call.1} parent=31 // pred_check_branch
        %2260 = sbr.rel (%p2258) target = $region36
      $region35: #{tpu_custom_call.1} parent=31 // pred_region
        _
      $region36: #{tpu_custom_call.1} parent=31 // pred_fallthru
        _
    $region32: #{tpu_custom_call.1} parent=5 // pred_fallthru
      _
    %p2261 = scmp.le.s32.totalorder 2, %s9
    // Predicated region
    $region37: #{tpu_custom_call.1} parent=5 // pred_check
      %p2262 = pneg %p2261
    $region38: #{tpu_custom_call.1} parent=5 // pred_check_branch
      %2264 = sbr.rel (%p2262) target = $region40
    $region39: #{tpu_custom_call.1} parent=5 // pred_region
      %s2265 = ssub.s32 %s9, 2
      // Predicated region
      $region41: #{tpu_custom_call.1} parent=39 // pred_check
        %p2266 = pneg %p130
      $region42: #{tpu_custom_call.1} parent=39 // pred_check_branch
        %2268 = sbr.rel (%p2266) target = $region44
      $region43: #{tpu_custom_call.1} parent=39 // pred_region
        %p2269 = scmp.lt.s32.totalorder %s20, 1
        %s2270 = scalar_select %p2269, %s20, 1
        %p2271 = scmp.lt.s32.totalorder %s21, 0
        %s2272 = scalar_select %p2271, %s21, 0
        %s2273 = smul.addr %s2270, 128
        %s2274 = sadd.s32 %s2272, %s2273
        %s2275 = smul.addr %s2274, 4
        %s2276 = scalar_lea.vmem %s3, %s2275
      $region44: #{tpu_custom_call.1} parent=39 // pred_fallthru
        _
    $region40: #{tpu_custom_call.1} parent=5 // pred_fallthru
      _
  $region6: #{tpu_custom_call.1} parent=0 // loop_footer
    %s13 = sadd.s32 1, %s9
  $region7: #{tpu_custom_call.1} parent=0 // loop_footer_branch
    %8 = sbr.rel target = $region3
  $region8: #{tpu_custom_call.1} parent=0 // loop_exit
    _

</llo_original>
